<compile_context>
chip_gen: v6e
topology: v6e:2x2x1
jax: 0.10.0
libtpu: 0.0.40
codegen_flags: <defaults>
</compile_context>

<pallas_src>
import functools

import jax
import jax.numpy as jnp
from jax.experimental import pallas as pl
from jax.experimental.pallas import tpu as pltpu


def _self_attn_kernel(x_ref, wq_ref, wu_ref, bu_ref, o_ref, *,
                      heads, k, t, bb, compute_dtype, lane_dense_out):
    f32 = jnp.float32
    cdt = compute_dtype
    hk = heads * k
    bh = heads * bb

    # ---- Q = K = V projection: one lane-dense matmul, N = heads*k ----------
    x2 = x_ref[...].reshape(bb * t, k)                       # (bb*t, k) f32
    ph = jnp.dot(x2.astype(cdt), wq_ref[...],
                 preferred_element_type=f32)                 # (bb*t, hk) f32

    # ---- split heads with static lane slices; head-major batch order -------
    ph_h = jnp.stack([ph[:, h * k:(h + 1) * k] for h in range(heads)],
                     axis=0)                                 # (heads, bb*t, k)
    ph_h = ph_h.reshape(bh, t, k)                            # (heads*bb, t, k)

    # logits scale 1/sqrt(k) (== q,k each / k**0.25) folded into q only.
    q = (ph_h * (float(k) ** -0.5)).astype(cdt)              # (bh, t, k)
    kv = ph_h.astype(cdt)                                    # keys == values

    # ---- attention: head-batched QK^T, softmax, PV --------------------------
    logits = jax.lax.dot_general(
        q, kv, dimension_numbers=(((2,), (2,)), ((0,), (0,))),
        preferred_element_type=f32)                          # (bh, t, t)
    m = jnp.max(logits, axis=-1, keepdims=True)
    e = jnp.exp(logits - m)
    denom = jnp.sum(e, axis=-1, keepdims=True)               # (bh, t, 1)
    pv = jax.lax.dot_general(
        e.astype(cdt), kv, dimension_numbers=(((2,), (1,)), ((0,), (0,))),
        preferred_element_type=f32)                          # (bh, t, k)
    # Normalize after PV (bh*t*k elements instead of bh*t*t); EUP reciprocal.
    ctx = pv * pl.reciprocal(denom, approx=True)             # (bh, t, k) f32

    # ---- unify_heads: one (bb*t, hk) @ (hk, k) matmul + bias ----------------
    ctx_h = ctx.reshape(heads, bb * t, k)
    hcat = jnp.concatenate([ctx_h[h] for h in range(heads)], axis=-1)  # (bb*t, hk)
    y = jnp.dot(hcat.astype(cdt), wu_ref[...],
                preferred_element_type=f32) + bu_ref[...]    # (bb*t, k) f32

    if lane_dense_out:
        # (bb, t*k) output block: >=128 lanes -> unmasked vector stores.
        y3 = y.reshape(bb, t, k)
        out = jnp.concatenate([y3[:, i, :] for i in range(t)], axis=-1)
        o_ref[...] = out.astype(o_ref.dtype)                 # (bb, t*k)
    else:
        o_ref[...] = y.reshape(bb, t, k).astype(o_ref.dtype)


def self_attention(x, wq, wu_w, wu_b, *, heads, batch_block=8,
                   compute_dtype=jnp.bfloat16, multicore_split=True):
    """x: (b, t, k) float32.
    wq:   (heads*k, k)  PyTorch to_queries Linear weight.
    wu_w: (k, heads*k)  PyTorch unify_heads Linear weight.
    wu_b: (k,)          PyTorch unify_heads bias."""
    b, t, k = x.shape
    hk = heads * k
    assert wq.shape == (hk, k)
    assert wu_w.shape == (k, hk)
    assert wu_b.shape == (k,)
    assert t % 8 == 0, "sequence length must be a multiple of 8 (sublane tile)"

    f32b = 4
    cdtb = jnp.dtype(compute_dtype).itemsize

    def vmem_bytes(bb):
        bh = bb * heads
        est = 0
        est += 2 * (bb * t * k * f32b) * 2          # x / out blocks (double buffered)
        est += bb * t * hk * (f32b + cdtb)          # ph + hcat
        est += 2 * bh * t * k * cdtb                # q, kv
        est += 2 * bh * t * t * f32b                # logits + exp  (dominant term)
        est += bh * t * t * cdtb                    # exp cast for PV matmul
        est += 2 * bh * t * k * f32b                # pv / normalized context
        est += 2 * (k * hk + hk * k) * cdtb         # weights (double buffered)
        return est

    budget = 28 * 2**20              # conservative: fits every TPU generation
    max_bb = max(1, min(b, batch_block))
    if multicore_split and b >= 2:
        # Keep >= 2 grid steps so v7x can shard the "parallel" axis over its
        # two TensorCores (costs one extra ~0.35us step on v5e/v6e).
        max_bb = min(max_bb, max(1, b // 2))
    bb = 1
    for cand in range(1, max_bb + 1):
        if b % cand == 0 and vmem_bytes(cand) <= budget:
            bb = cand
    num_steps = b // bb

    # Lane-dense output block (bb, t*k) only when it satisfies the (8,128)
    # block rule (bb divisible by 8 or bb == b) and stays cheap to assemble.
    lane_dense_out = ((t * k) % 128 == 0 and (bb == b or bb % 8 == 0)
                      and t <= 128)

    # PyTorch Linear weights -> matmul-ready layouts, pre-cast once in XLA so
    # the kernel never converts them.
    wq2 = jnp.asarray(wq.T, dtype=compute_dtype)             # (k, hk)
    wu2 = jnp.asarray(wu_w.T, dtype=compute_dtype)           # (hk, k)
    bu2 = jnp.asarray(wu_b.reshape(1, k), dtype=jnp.float32)

    kernel = functools.partial(_self_attn_kernel, heads=heads, k=k, t=t, bb=bb,
                               compute_dtype=compute_dtype,
                               lane_dense_out=lane_dense_out)

    if lane_dense_out:
        out_shape = jax.ShapeDtypeStruct((b, t * k), x.dtype)
        out_spec = pl.BlockSpec((bb, t * k), lambda i: (i, 0))
    else:
        out_shape = jax.ShapeDtypeStruct((b, t, k), x.dtype)
        out_spec = pl.BlockSpec((bb, t, k), lambda i: (i, 0, 0))

    if num_steps >= 8:
        # Long grid with tiny per-step compute: deeper input buffering.
        x_spec = pl.BlockSpec((bb, t, k), lambda i: (i, 0, 0),
                              pipeline_mode=pl.Buffered(3))
    else:
        x_spec = pl.BlockSpec((bb, t, k), lambda i: (i, 0, 0))

    vmem_limit = int(max(32 * 2**20, min(2 * vmem_bytes(bb), 56 * 2**20)))

    out = pl.pallas_call(
        kernel,
        out_shape=out_shape,
        grid_spec=pltpu.PrefetchScalarGridSpec(
            num_scalar_prefetch=0,
            grid=(num_steps,),
            in_specs=[
                x_spec,
                pl.BlockSpec((k, hk), lambda i: (0, 0)),
                pl.BlockSpec((hk, k), lambda i: (0, 0)),
                pl.BlockSpec((1, k), lambda i: (0, 0)),
            ],
            out_specs=out_spec,
        ),
        compiler_params=pltpu.CompilerParams(
            dimension_semantics=("parallel",),
            vmem_limit_bytes=vmem_limit),
    )(x, wq2, wu2, bu2)

    if lane_dense_out:
        out = out.reshape(b, t, k)
    return out


def self_attention_ref(x, wq, wu_w, wu_b, *, heads):
    """Pure-JAX reference reproducing the PyTorch forward exactly."""
    b, t, k = x.shape
    h = heads
    proj = x @ wq.T                                        # (b, t, h*k)
    qkv = proj.reshape(b, t, h, k).transpose(0, 2, 1, 3)   # (b, h, t, k)
    scale = float(k) ** 0.25
    q = qkv / scale
    kk = qkv / scale
    v = qkv
    dot = jnp.einsum('bhtk,bhsk->bhts', q, kk)
    dot = jax.nn.softmax(dot, axis=-1)
    out = jnp.einsum('bhts,bhsk->bhtk', dot, v)            # (b, h, t, k)
    out = out.transpose(0, 2, 1, 3).reshape(b, t, h * k)
    return out @ wu_w.T + wu_b


if __name__ == "__main__":
    b, t, k, heads = 2, 8, 32, 8

    key = jax.random.PRNGKey(0)
    kx, kq, kw, kb = jax.random.split(key, 4)

    x = jax.random.normal(kx, (b, t, k), dtype=jnp.float32)
    # Deterministic synthetic parameters (PyTorch Linear weight layouts):
    wq = jax.random.normal(kq, (heads * k, k), dtype=jnp.float32) * 0.05
    wu_w = jax.random.normal(kw, (k, heads * k), dtype=jnp.float32) * 0.05
    wu_b = jax.random.normal(kb, (k,), dtype=jnp.float32) * 0.01

    ref = self_attention_ref(x, wq, wu_w, wu_b, heads=heads)

    # f32 MXU path, default policy -> bb=1, grid=(2,) "parallel" (2-TC v7x),
    # 3-D output block.  Only the softmax reciprocal is approximate.
    out_f32 = jax.block_until_ready(
        self_attention(x, wq, wu_w, wu_b, heads=heads,
                       compute_dtype=jnp.float32))
    assert out_f32.shape == (b, t, k)
    assert jnp.allclose(out_f32, ref, atol=1e-2, rtol=1e-2), (
        f"f32 path max abs err {jnp.max(jnp.abs(out_f32 - ref))}")

    # bf16 MXU-operand path (f32 accumulation / softmax) with a single grid
    # step -> exercises the lane-dense (bb, t*k) output block.
    out_bf16 = jax.block_until_ready(
        self_attention(x, wq, wu_w, wu_b, heads=heads,
                       compute_dtype=jnp.bfloat16, batch_block=b,
                       multicore_split=False))
    assert out_bf16.shape == (b, t, k)
    assert jnp.allclose(out_bf16, ref, atol=5e-2, rtol=5e-2), (
        f"bf16 path max abs err {jnp.max(jnp.abs(out_bf16 - ref))}")

    print("KERNEL_OK")
</pallas_src>

<mosaic_0001>
module attributes {stable_mosaic.version = 11 : i64} {
  func.func @_self_attn_kernel(%arg0: i32, %arg1: memref<1x8x32xf32, #tpu.memory_space<vmem>>, %arg2: memref<32x256xf32, #tpu.memory_space<vmem>>, %arg3: memref<256x32xf32, #tpu.memory_space<vmem>>, %arg4: memref<1x32xf32, #tpu.memory_space<vmem>>, %arg5: memref<1x8x32xf32, #tpu.memory_space<vmem>>) attributes {dimension_semantics = [#tpu.dimension_semantics<parallel>], iteration_bounds = array<i64: 2>, scalar_prefetch = 0 : i64, scratch_operands = 0 : i64, tpu.core_type = #tpu.core_type<tc>, window_params = [{transform_indices = @transform_0, window_bounds = array<i64: 1, 8, 32>}, {pipeline_mode = #tpu.pipeline_mode<synchronous>, transform_indices = @transform_1, window_bounds = array<i64: 32, 256>}, {pipeline_mode = #tpu.pipeline_mode<synchronous>, transform_indices = @transform_2, window_bounds = array<i64: 256, 32>}, {pipeline_mode = #tpu.pipeline_mode<synchronous>, transform_indices = @transform_3, window_bounds = array<i64: 1, 32>}, {transform_indices = @transform_4, window_bounds = array<i64: 1, 8, 32>}]} {
    %c0 = arith.constant 0 : index
    %c0_0 = arith.constant 0 : index
    %c0_1 = arith.constant 0 : index
    %0 = vector.load %arg1[%c0, %c0_0, %c0_1] : memref<1x8x32xf32, #tpu.memory_space<vmem>>, vector<1x8x32xf32>
    %1 = vector.shape_cast %0 : vector<1x8x32xf32> to vector<8x32xf32>
    %c0_2 = arith.constant 0 : index
    %c0_3 = arith.constant 0 : index
    %2 = vector.load %arg2[%c0_2, %c0_3] : memref<32x256xf32, #tpu.memory_space<vmem>>, vector<32x256xf32>
    %cst = arith.constant dense<0.000000e+00> : vector<8x256xf32>
    %3 = tpu.matmul %1, %2, %cst {dimension_numbers = #tpu.dot_dimension_numbers<[1], [0], [0], [1], [0, 0, 1, 1], [], []>} : vector<8x32xf32>, vector<32x256xf32>, vector<8x256xf32> -> vector<8x256xf32>
    %4 = vector.extract_strided_slice %3 {offsets = [0, 0], sizes = [8, 32], strides = [1, 1]} : vector<8x256xf32> to vector<8x32xf32>
    %5 = vector.extract_strided_slice %3 {offsets = [0, 32], sizes = [8, 32], strides = [1, 1]} : vector<8x256xf32> to vector<8x32xf32>
    %6 = vector.extract_strided_slice %3 {offsets = [0, 64], sizes = [8, 32], strides = [1, 1]} : vector<8x256xf32> to vector<8x32xf32>
    %7 = vector.extract_strided_slice %3 {offsets = [0, 96], sizes = [8, 32], strides = [1, 1]} : vector<8x256xf32> to vector<8x32xf32>
    %8 = vector.extract_strided_slice %3 {offsets = [0, 128], sizes = [8, 32], strides = [1, 1]} : vector<8x256xf32> to vector<8x32xf32>
    %9 = vector.extract_strided_slice %3 {offsets = [0, 160], sizes = [8, 32], strides = [1, 1]} : vector<8x256xf32> to vector<8x32xf32>
    %10 = vector.extract_strided_slice %3 {offsets = [0, 192], sizes = [8, 32], strides = [1, 1]} : vector<8x256xf32> to vector<8x32xf32>
    %11 = vector.extract_strided_slice %3 {offsets = [0, 224], sizes = [8, 32], strides = [1, 1]} : vector<8x256xf32> to vector<8x32xf32>
    %12 = vector.shape_cast %4 : vector<8x32xf32> to vector<1x8x32xf32>
    %13 = vector.shape_cast %5 : vector<8x32xf32> to vector<1x8x32xf32>
    %14 = vector.shape_cast %6 : vector<8x32xf32> to vector<1x8x32xf32>
    %15 = vector.shape_cast %7 : vector<8x32xf32> to vector<1x8x32xf32>
    %16 = vector.shape_cast %8 : vector<8x32xf32> to vector<1x8x32xf32>
    %17 = vector.shape_cast %9 : vector<8x32xf32> to vector<1x8x32xf32>
    %18 = vector.shape_cast %10 : vector<8x32xf32> to vector<1x8x32xf32>
    %19 = vector.shape_cast %11 : vector<8x32xf32> to vector<1x8x32xf32>
    %20 = tpu.concatenate %12, %13, %14, %15, %16, %17, %18, %19 in 0 : vector<1x8x32xf32>, vector<1x8x32xf32>, vector<1x8x32xf32>, vector<1x8x32xf32>, vector<1x8x32xf32>, vector<1x8x32xf32>, vector<1x8x32xf32>, vector<1x8x32xf32> -> vector<8x8x32xf32>
    %cst_4 = arith.constant 0.176776692 : f32
    %21 = vector.broadcast %cst_4 : f32 to vector<8x8x32xf32>
    %22 = arith.mulf %20, %21 : vector<8x8x32xf32>
    %cst_5 = arith.constant dense<0.000000e+00> : vector<8x8x8xf32>
    %23 = tpu.matmul %22, %20, %cst_5 {dimension_numbers = #tpu.dot_dimension_numbers<[2], [2], [1], [1], [0, 0, 0, 1, 1, 1], [0], [0]>} : vector<8x8x32xf32>, vector<8x8x32xf32>, vector<8x8x8xf32> -> vector<8x8x8xf32>
    %cst_6 = arith.constant dense<0xFF800000> : vector<8x8xf32>
    %24 = vector.multi_reduction <maximumf>, %23, %cst_6 [2] : vector<8x8x8xf32> to vector<8x8xf32>
    %25 = vector.shape_cast %24 : vector<8x8xf32> to vector<8x8x1xf32>
    %26 = vector.broadcast %25 : vector<8x8x1xf32> to vector<8x8x8xf32>
    %27 = arith.subf %23, %26 : vector<8x8x8xf32>
    %28 = math.exp %27 : vector<8x8x8xf32>
    %cst_7 = arith.constant dense<0.000000e+00> : vector<8x8xf32>
    %29 = vector.multi_reduction <add>, %28, %cst_7 [2] : vector<8x8x8xf32> to vector<8x8xf32>
    %30 = vector.shape_cast %29 : vector<8x8xf32> to vector<8x8x1xf32>
    %cst_8 = arith.constant dense<0.000000e+00> : vector<8x8x32xf32>
    %31 = tpu.matmul %28, %20, %cst_8 {dimension_numbers = #tpu.dot_dimension_numbers<[2], [1], [1], [2], [0, 0, 0, 1, 1, 2], [0], [0]>} : vector<8x8x8xf32>, vector<8x8x32xf32>, vector<8x8x32xf32> -> vector<8x8x32xf32>
    %32 = tpu.reciprocal %30 {approx = true} : vector<8x8x1xf32> -> vector<8x8x1xf32>
    %33 = vector.broadcast %32 : vector<8x8x1xf32> to vector<8x8x32xf32>
    %34 = arith.mulf %31, %33 : vector<8x8x32xf32>
    %35 = vector.extract_strided_slice %34 {offsets = [0, 0, 0], sizes = [1, 8, 32], strides = [1, 1, 1]} : vector<8x8x32xf32> to vector<1x8x32xf32>
    %36 = vector.shape_cast %35 : vector<1x8x32xf32> to vector<8x32xf32>
    %37 = vector.extract_strided_slice %34 {offsets = [1, 0, 0], sizes = [1, 8, 32], strides = [1, 1, 1]} : vector<8x8x32xf32> to vector<1x8x32xf32>
    %38 = vector.shape_cast %37 : vector<1x8x32xf32> to vector<8x32xf32>
    %39 = vector.extract_strided_slice %34 {offsets = [2, 0, 0], sizes = [1, 8, 32], strides = [1, 1, 1]} : vector<8x8x32xf32> to vector<1x8x32xf32>
    %40 = vector.shape_cast %39 : vector<1x8x32xf32> to vector<8x32xf32>
    %41 = vector.extract_strided_slice %34 {offsets = [3, 0, 0], sizes = [1, 8, 32], strides = [1, 1, 1]} : vector<8x8x32xf32> to vector<1x8x32xf32>
    %42 = vector.shape_cast %41 : vector<1x8x32xf32> to vector<8x32xf32>
    %43 = vector.extract_strided_slice %34 {offsets = [4, 0, 0], sizes = [1, 8, 32], strides = [1, 1, 1]} : vector<8x8x32xf32> to vector<1x8x32xf32>
    %44 = vector.shape_cast %43 : vector<1x8x32xf32> to vector<8x32xf32>
    %45 = vector.extract_strided_slice %34 {offsets = [5, 0, 0], sizes = [1, 8, 32], strides = [1, 1, 1]} : vector<8x8x32xf32> to vector<1x8x32xf32>
    %46 = vector.shape_cast %45 : vector<1x8x32xf32> to vector<8x32xf32>
    %47 = vector.extract_strided_slice %34 {offsets = [6, 0, 0], sizes = [1, 8, 32], strides = [1, 1, 1]} : vector<8x8x32xf32> to vector<1x8x32xf32>
    %48 = vector.shape_cast %47 : vector<1x8x32xf32> to vector<8x32xf32>
    %49 = vector.extract_strided_slice %34 {offsets = [7, 0, 0], sizes = [1, 8, 32], strides = [1, 1, 1]} : vector<8x8x32xf32> to vector<1x8x32xf32>
    %50 = vector.shape_cast %49 : vector<1x8x32xf32> to vector<8x32xf32>
    %51 = tpu.concatenate %36, %38, %40, %42, %44, %46, %48, %50 in 1 : vector<8x32xf32>, vector<8x32xf32>, vector<8x32xf32>, vector<8x32xf32>, vector<8x32xf32>, vector<8x32xf32>, vector<8x32xf32>, vector<8x32xf32> -> vector<8x256xf32>
    %c0_9 = arith.constant 0 : index
    %c0_10 = arith.constant 0 : index
    %52 = vector.load %arg3[%c0_9, %c0_10] : memref<256x32xf32, #tpu.memory_space<vmem>>, vector<256x32xf32>
    %cst_11 = arith.constant dense<0.000000e+00> : vector<8x32xf32>
    %53 = tpu.matmul %51, %52, %cst_11 {dimension_numbers = #tpu.dot_dimension_numbers<[1], [0], [0], [1], [0, 0, 1, 1], [], []>} : vector<8x256xf32>, vector<256x32xf32>, vector<8x32xf32> -> vector<8x32xf32>
    %c0_12 = arith.constant 0 : index
    %c0_13 = arith.constant 0 : index
    %54 = vector.load %arg4[%c0_12, %c0_13] : memref<1x32xf32, #tpu.memory_space<vmem>>, vector<1x32xf32>
    %55 = vector.broadcast %54 : vector<1x32xf32> to vector<8x32xf32>
    %56 = arith.addf %53, %55 : vector<8x32xf32>
    %57 = vector.shape_cast %56 : vector<8x32xf32> to vector<1x8x32xf32>
    %c0_14 = arith.constant 0 : index
    %c0_15 = arith.constant 0 : index
    %c0_16 = arith.constant 0 : index
    %58 = vector.load %arg5[%c0_14, %c0_15, %c0_16] : memref<1x8x32xf32, #tpu.memory_space<vmem>>, vector<1x8x32xf32>
    tpu.vector_store %arg5[%c0_14, %c0_15, %c0_16], %57 {strides = array<i32>} : memref<1x8x32xf32, #tpu.memory_space<vmem>>, vector<1x8x32xf32>,
    return
  }
  func.func @transform_0(%arg0: i32) -> (i32, i32, i32) {
    %c0_i32 = arith.constant 0 : i32
    %c0_i32_0 = arith.constant 0 : i32
    %c0_i32_1 = arith.constant 0 : i32
    return %arg0, %c0_i32, %c0_i32_0 : i32, i32, i32
  }
  func.func @transform_1(%arg0: i32) -> (i32, i32) {
    %c0_i32 = arith.constant 0 : i32
    %c0_i32_0 = arith.constant 0 : i32
    %c0_i32_1 = arith.constant 0 : i32
    return %c0_i32, %c0_i32_0 : i32, i32
  }
  func.func @transform_2(%arg0: i32) -> (i32, i32) {
    %c0_i32 = arith.constant 0 : i32
    %c0_i32_0 = arith.constant 0 : i32
    %c0_i32_1 = arith.constant 0 : i32
    return %c0_i32, %c0_i32_0 : i32, i32
  }
  func.func @transform_3(%arg0: i32) -> (i32, i32) {
    %c0_i32 = arith.constant 0 : i32
    %c0_i32_0 = arith.constant 0 : i32
    %c0_i32_1 = arith.constant 0 : i32
    return %c0_i32, %c0_i32_0 : i32, i32
  }
  func.func @transform_4(%arg0: i32) -> (i32, i32, i32) {
    %c0_i32 = arith.constant 0 : i32
    %c0_i32_0 = arith.constant 0 : i32
    %c0_i32_1 = arith.constant 0 : i32
    return %arg0, %c0_i32, %c0_i32_0 : i32, i32, i32
  }
}

</mosaic_0001>

<llo_original>
// kernel: tpu_custom_call.1
$region0: #{tpu_custom_call.1}
  #allocation0 [shape = 'u32[]', space=smem, size = 0x4, offset = 0x4, fixed_abs, tag = 'smem constant byte address 0x4 - core index']
  #allocation1 [shape = 'u32[144,128]{1,0:T(1,128)}', space=vmem, size = 0x12000, scoped, tag = 'internal scratch']
  %s0 = inlined_call_operand.vmem [shape: f32[2,8,32], index: 0, kind: input, shape index: {}]
  %s1 = inlined_call_operand.vmem [shape: f32[32,256], index: 1, kind: input, shape index: {}]
  %s2 = inlined_call_operand.vmem [shape: f32[256,32], index: 2, kind: input, shape index: {}]
  %s3 = inlined_call_operand.vmem [shape: f32[1,32], index: 3, kind: input, shape index: {}]
  %s4 = inlined_call_operand.hbm [shape: f32[2,8,32], index: 4, kind: output, shape index: {}]
  %s5 = sld [smem:[#allocation0]]
  $region49: #{tpu_custom_call.1} parent=0
    _
  %s7 = ssub.s32 1, %s5
  %s8 = scalar_select 0, %s7, %s5
  $region1: #{tpu_custom_call.1} parent=0
    #allocation2 [shape = 'u8[8192]{0}', space=vmem, size = 0x2000, scoped, tag = 'output window, operand 0']
    #allocation3 [shape = 's32[2]{0}', space=sflag, size = 0x8, scoped, tag = 'scoped memory for tpu_custom_call.1']
    %9 = vsyncpa [#allocation3], 0
    %s10 = scalar_lea.sflag [#allocation3], 1
    %11 = vsyncpa %s10, 0
    loop: start=0, step=1, limit=4
    $region2: #{tpu_custom_call.1} parent=1 // loop_pre_header
      _
    $region3: #{tpu_custom_call.1} parent=1 // loop_header
      %s13 = sphi 0, %s17
      %p14 = scmp.ge.s32.totalorder %s13, 4
      %s23 = sphi 0, %s25
      %s26 = sphi 0, %s23
      %s27 = sphi 0, %s26
      %s43 = sphi 0, %s27
      %s47 = sphi 0, %s47
      %s49 = sphi 0, %s47
      %s50 = sphi 0, %s49
      %s64 = sphi 0, %s50
      %s68 = sphi 0, %s68
      %s70 = sphi 0, %s68
      %s71 = sphi 0, %s70
      %s85 = sphi 0, %s71
      %s89 = sphi 0, %s89
      %s91 = sphi 0, %s89
      %s92 = sphi 0, %s91
      %s106 = sphi 0, %s92
      %s112 = sphi 0, %s114
      %s115 = sphi 0, %s112
      %s116 = sphi 0, %s115
      %s132 = sphi 0, %s116
    $region4: #{tpu_custom_call.1} parent=1 // loop_header_branch
      %16 = sbr.rel (%p14) target = $region8
    $region5: #{tpu_custom_call.1} parent=1 // loop_body
      %s18 = ssub.s32 %s13, 1
      %s19 = ssub.s32 %s13, 2
      %s20 = sadd.s32 %s13, 1
      %s21 = ssub.s32 %s13, %s20
      %p22 = scmp.eq.s32.totalorder %s21, 0
      %s24 = sadd.s32 %s23, 1
      %s25 = scalar_select %p22, %s23, %s24
      %p28 = pneg %p22
      %p29 = scmp.eq.s32.totalorder %s13, 1
      %p30 = por %p28, %p29
      %p31 = scmp.ne.s32.totalorder %s23, %s26
      %p32 = scmp.eq.s32.totalorder %s13, 0
      %p33 = por %p31, %p32
      %p34 = scmp.ne.s32.totalorder %s23, %s26
      %p35 = scmp.eq.s32.totalorder %s18, 1
      %p36 = por %p34, %p35
      %p37 = scmp.ne.s32.totalorder %s26, %s27
      %p38 = scmp.eq.s32.totalorder %s18, 0
      %p39 = por %p37, %p38
      %p40 = scmp.ne.s32.totalorder %s26, %s27
      %p41 = scmp.eq.s32.totalorder %s19, 1
      %p42 = por %p40, %p41
      %p44 = scmp.ne.s32.totalorder %s27, %s43
      %p45 = scmp.eq.s32.totalorder %s19, 0
      %p46 = por %p44, %p45
      %s48 = sadd.s32 %s47, 1
      %p51 = scmp.eq.s32.totalorder %s13, 1
      %p52 = scmp.ne.s32.totalorder %s47, %s49
      %p53 = scmp.eq.s32.totalorder %s13, 0
      %p54 = por %p52, %p53
      %p55 = scmp.ne.s32.totalorder %s47, %s49
      %p56 = scmp.eq.s32.totalorder %s18, 1
      %p57 = por %p55, %p56
      %p58 = scmp.ne.s32.totalorder %s49, %s50
      %p59 = scmp.eq.s32.totalorder %s18, 0
      %p60 = por %p58, %p59
      %p61 = scmp.ne.s32.totalorder %s49, %s50
      %p62 = scmp.eq.s32.totalorder %s19, 1
      %p63 = por %p61, %p62
      %p65 = scmp.ne.s32.totalorder %s50, %s64
      %p66 = scmp.eq.s32.totalorder %s19, 0
      %p67 = por %p65, %p66
      %s69 = sadd.s32 %s68, 1
      %p72 = scmp.eq.s32.totalorder %s13, 1
      %p73 = scmp.ne.s32.totalorder %s68, %s70
      %p74 = scmp.eq.s32.totalorder %s13, 0
      %p75 = por %p73, %p74
      %p76 = scmp.ne.s32.totalorder %s68, %s70
      %p77 = scmp.eq.s32.totalorder %s18, 1
      %p78 = por %p76, %p77
      %p79 = scmp.ne.s32.totalorder %s70, %s71
      %p80 = scmp.eq.s32.totalorder %s18, 0
      %p81 = por %p79, %p80
      %p82 = scmp.ne.s32.totalorder %s70, %s71
      %p83 = scmp.eq.s32.totalorder %s19, 1
      %p84 = por %p82, %p83
      %p86 = scmp.ne.s32.totalorder %s71, %s85
      %p87 = scmp.eq.s32.totalorder %s19, 0
      %p88 = por %p86, %p87
      %s90 = sadd.s32 %s89, 1
      %p93 = scmp.eq.s32.totalorder %s13, 1
      %p94 = scmp.ne.s32.totalorder %s89, %s91
      %p95 = scmp.eq.s32.totalorder %s13, 0
      %p96 = por %p94, %p95
      %p97 = scmp.ne.s32.totalorder %s89, %s91
      %p98 = scmp.eq.s32.totalorder %s18, 1
      %p99 = por %p97, %p98
      %p100 = scmp.ne.s32.totalorder %s91, %s92
      %p101 = scmp.eq.s32.totalorder %s18, 0
      %p102 = por %p100, %p101
      %p103 = scmp.ne.s32.totalorder %s91, %s92
      %p104 = scmp.eq.s32.totalorder %s19, 1
      %p105 = por %p103, %p104
      %p107 = scmp.ne.s32.totalorder %s92, %s106
      %p108 = scmp.eq.s32.totalorder %s19, 0
      %p109 = por %p107, %p108
      %s110 = ssub.s32 %s13, %s20
      %p111 = scmp.eq.s32.totalorder %s110, 0
      %s113 = sadd.s32 %s112, 1
      %s114 = scalar_select %p111, %s112, %s113
      %p117 = pneg %p111
      %p118 = scmp.eq.s32.totalorder %s13, 1
      %p119 = por %p117, %p118
      %p120 = scmp.ne.s32.totalorder %s112, %s115
      %p121 = scmp.eq.s32.totalorder %s13, 0
      %p122 = por %p120, %p121
      %p123 = scmp.ne.s32.totalorder %s112, %s115
      %p124 = scmp.eq.s32.totalorder %s18, 1
      %p125 = por %p123, %p124
      %p126 = scmp.ne.s32.totalorder %s115, %s116
      %p127 = scmp.eq.s32.totalorder %s18, 0
      %p128 = por %p126, %p127
      %p129 = scmp.ne.s32.totalorder %s115, %s116
      %p130 = scmp.eq.s32.totalorder %s19, 1
      %p131 = por %p129, %p130
      %p133 = scmp.ne.s32.totalorder %s116, %s132
      %p134 = scmp.eq.s32.totalorder %s19, 0
      %p135 = por %p133, %p134
      %p136 = scmp.le.s32.totalorder 1, %s13
      %p137 = scmp.lt.s32.totalorder %s13, 3
      %p138 = pnand %p136, %p137
      %p139 = pneg %p138
      // Predicated region
      $region9: #{tpu_custom_call.1} parent=5 // pred_check
        _
      $region10: #{tpu_custom_call.1} parent=5 // pred_check_branch
        %141 = sbr.rel (%p138) target = $region12
      $region11: #{tpu_custom_call.1} parent=5 // pred_region
        %s142 = ssub.s32 %s13, 1
        // Predicated region
        $region13: #{tpu_custom_call.1} parent=11 // pred_check
          %p143 = pneg %p60
        $region14: #{tpu_custom_call.1} parent=11 // pred_check_branch
          %145 = sbr.rel (%p143) target = $region16
        $region15: #{tpu_custom_call.1} parent=11 // pred_region
          _
        $region16: #{tpu_custom_call.1} parent=11 // pred_fallthru
          _
        // Predicated region
        $region17: #{tpu_custom_call.1} parent=11 // pred_check
          %p146 = pneg %p81
        $region18: #{tpu_custom_call.1} parent=11 // pred_check_branch
          %148 = sbr.rel (%p146) target = $region20
        $region19: #{tpu_custom_call.1} parent=11 // pred_region
          _
        $region20: #{tpu_custom_call.1} parent=11 // pred_fallthru
          _
        // Predicated region
        $region21: #{tpu_custom_call.1} parent=11 // pred_check
          %p149 = pneg %p102
        $region22: #{tpu_custom_call.1} parent=11 // pred_check_branch
          %151 = sbr.rel (%p149) target = $region24
        $region23: #{tpu_custom_call.1} parent=11 // pred_region
          _
        $region24: #{tpu_custom_call.1} parent=11 // pred_fallthru
          _
      $region12: #{tpu_custom_call.1} parent=5 // pred_fallthru
        _
      %p152 = scmp.lt.s32.totalorder %s13, 2
      // Predicated region
      $region25: #{tpu_custom_call.1} parent=5 // pred_check
        %p153 = pneg %p152
      $region26: #{tpu_custom_call.1} parent=5 // pred_check_branch
        %155 = sbr.rel (%p153) target = $region28
      $region27: #{tpu_custom_call.1} parent=5 // pred_region
        // Predicated region
        $region29: #{tpu_custom_call.1} parent=27 // pred_check
          %p156 = pneg %p33
        $region30: #{tpu_custom_call.1} parent=27 // pred_check_branch
          %158 = sbr.rel (%p156) target = $region32
        $region31: #{tpu_custom_call.1} parent=27 // pred_region
          %p159 = scmp.lt.s32.totalorder %s13, 1
          %s160 = scalar_select %p159, %s13, 1
          %s161 = smul.addr %s160, 8
          %s162 = scalar_lea.vmem %s0, %s161
        $region32: #{tpu_custom_call.1} parent=27 // pred_fallthru
          _
      $region28: #{tpu_custom_call.1} parent=5 // pred_fallthru
        _
      %p163 = scmp.le.s32.totalorder 1, %s13
      %p164 = scmp.lt.s32.totalorder %s13, 3
      %p165 = pnand %p163, %p164
      %p166 = pneg %p165
      // Predicated region
      $region33: #{tpu_custom_call.1} parent=5 // pred_check
        _
      $region34: #{tpu_custom_call.1} parent=5 // pred_check_branch
        %168 = sbr.rel (%p165) target = $region36
      $region35: #{tpu_custom_call.1} parent=5 // pred_region
        %s169 = ssub.s32 %s13, 1
        %p170 = scmp.lt.s32.totalorder %s18, 1
        %s171 = scalar_select %p170, %s18, 1
        %s172 = smul.addr %s171, 8
        %s173 = scalar_lea.vmem %s0, %s172
        %p174 = pneg %p39
        %p175 = pneg %p36
        %p176 = pneg %p60
        %p177 = pneg %p57
        %p178 = pneg %p81
        %p179 = pneg %p78
        %p180 = pneg %p102
        %p181 = pneg %p99
        %p182 = pneg %p128
        %p183 = pneg %p125
        %s184 = sand.u32 %s115, 1
        %s185 = scalar_lea.sflag [#allocation3], %s184
        %s186 = sand.u32 %s115, 1
        %s187 = smul.addr %s186, 8
        %s188 = scalar_lea.vmem [#allocation2], %s187
        %p189 = scmp.lt.s32.totalorder %s18, 1
        %s190 = scalar_select %p189, %s18, 1
        %s191 = smul.addr %s190, 8
        %s192 = scalar_lea.vmem %s0, %s191
        %v193 = vld [vmem:[%s192] sm:$0xff]
        %v194 = vld [vmem:[%s1] sm:$0xff]
        %v195 = vld [vmem:[%s1 + $0x8] sm:$0xff]
        %v196 = vld [vmem:[%s1 + $0x10] sm:$0xff]
        %v197 = vld [vmem:[%s1 + $0x18] sm:$0xff]
        %v198 = vld [vmem:[%s1 + $0x20] sm:$0xff]
        %v199 = vld [vmem:[%s1 + $0x28] sm:$0xff]
        %v200 = vld [vmem:[%s1 + $0x30] sm:$0xff]
        %v201 = vld [vmem:[%s1 + $0x38] sm:$0xff]
        %vm202 = vcmask 261120
        %v204 = vsel %vm202, %v193, 0
        %206 = vmatprep.subr.mxu0 0.0
        %207 = vmatpush1.msra.mxu0 0.0
        %208 = vmatprep.subr.mxu0 0.0
        %209 = vmatpush1.msra.mxu0 0.0
        %210 = vmatprep.subr.mxu0 0.0
        %211 = vmatpush1.msra.mxu0 0.0
        %212 = vmatprep.subr.mxu0 0.0
        %213 = vmatpush1.msra.mxu0 0.0
        %214 = vmatprep.subr.mxu0 0.0
        %215 = vmatpush1.msra.mxu0 0.0
        %216 = vmatprep.subr.mxu0 0.0
        %217 = vmatpush1.msra.mxu0 0.0
        %218 = vmatprep.subr.mxu0 0.0
        %219 = vmatpush1.msra.mxu0 0.0
        %220 = vmatprep.subr.mxu0 0.0
        %221 = vmatpush1.msra.mxu0 0.0
        %222 = vmatprep.subr.mxu0 0.0
        %223 = vmatpush1.msra.mxu0 0.0
        %224 = vmatprep.subr.mxu0 0.0
        %225 = vmatpush1.msra.mxu0 0.0
        %226 = vmatprep.subr.mxu0 0.0
        %227 = vmatpush1.msra.mxu0 0.0
        %228 = vmatprep.subr.mxu0 0.0
        %229 = vmatpush1.msra.mxu0 0.0
        %230 = vmatprep.subr.mxu0 %v201
        %231 = vmatpush1.msra.mxu0 %v200
        %232 = vmatprep.subr.mxu0 %v199
        %233 = vmatpush1.msra.mxu0 %v198
        %234 = vmatprep.subr.mxu0 %v197
        %235 = vmatpush1.msra.mxu0 %v196
        %236 = vmatprep.subr.mxu0 %v195
        %237 = vmatpush1.msra.mxu0 %v194
        %238 = vmatprep.subr.mxu0 0.0
        %239 = vmatpush2.msra.mxu0 0.0
        %240 = vmatprep.subr.mxu0 0.0
        %241 = vmatpush2.msra.mxu0 0.0
        %242 = vmatprep.subr.mxu0 0.0
        %243 = vmatpush2.msra.mxu0 0.0
        %244 = vmatprep.subr.mxu0 0.0
        %245 = vmatpush2.msra.mxu0 0.0
        %246 = vmatprep.subr.mxu0 0.0
        %247 = vmatpush2.msra.mxu0 0.0
        %248 = vmatprep.subr.mxu0 0.0
        %249 = vmatpush2.msra.mxu0 0.0
        %250 = vmatprep.subr.mxu0 0.0
        %251 = vmatpush2.msra.mxu0 0.0
        %252 = vmatprep.subr.mxu0 0.0
        %253 = vmatpush2.msra.mxu0 0.0
        %254 = vmatprep.subr.mxu0 0.0
        %255 = vmatpush2.msra.mxu0 0.0
        %256 = vmatprep.subr.mxu0 0.0
        %257 = vmatpush2.msra.mxu0 0.0
        %258 = vmatprep.subr.mxu0 0.0
        %259 = vmatpush2.msra.mxu0 0.0
        %260 = vmatprep.subr.mxu0 0.0
        %261 = vmatpush2.msra.mxu0 0.0
        %262 = vmatprep.subr.mxu0 0.0
        %263 = vmatpush2.msra.mxu0 0.0
        %264 = vmatprep.subr.mxu0 0.0
        %265 = vmatpush2.msra.mxu0 0.0
        %266 = vmatprep.subr.mxu0 0.0
        %267 = vmatpush2.msra.mxu0 0.0
        %268 = vmatprep.subr.mxu0 0.0
        %269 = vmatpush2.msra.mxu0 0.0
        %270 = vmatprep.mubr.f32.mxu0 0.0
        %271 = vmatmul.mubr.f32.gmra.mxu0 %v204
        %v272 = vpop.f32.mrf.mxu0
        %v273 = vadd.f32 0.0, %v272
        %v274 = vpop.f32.mrf.mxu0
        %v275 = vadd.f32 0.0, %v274
        %276 = vdwg.mxu0
        %278 = vrot.lane.b32.xlu0 %v273, 96
        %v279 = vpop.permute.xlu0 %278
        %281 = vrot.lane.b32.xlu0 %v273, 64
        %v282 = vpop.permute.xlu0 %281
        %284 = vrot.lane.b32.xlu0 %v273, 32
        %v285 = vpop.permute.xlu0 %284
        %288 = vrot.lane.b32.xlu0 %v275, 96
        %v289 = vpop.permute.xlu0 %288
        %291 = vrot.lane.b32.xlu0 %v275, 64
        %v292 = vpop.permute.xlu0 %291
        %294 = vrot.lane.b32.xlu0 %v275, 32
        %v295 = vpop.permute.xlu0 %294
        %v297 = vmul.f32 %v273, 0.17677669
        %v298 = vmul.f32 %v279, 0.17677669
        %v299 = vmul.f32 %v282, 0.17677669
        %v300 = vmul.f32 %v285, 0.17677669
        %v301 = vmul.f32 %v275, 0.17677669
        %v302 = vmul.f32 %v289, 0.17677669
        %v303 = vmul.f32 %v292, 0.17677669
        %v304 = vmul.f32 %v295, 0.17677669
        %v306 = vsel %vm202, %v297, 0
        %v308 = vsel %vm202, %v273, 0
        %310 = vmatprep.subr.mxu0 0.0
        %311 = vmatpush1.xpose.msra.mxu0 0.0
        %312 = vmatprep.subr.mxu0 0.0
        %313 = vmatpush1.xpose.msra.mxu0 0.0
        %314 = vmatprep.subr.mxu0 0.0
        %315 = vmatpush1.xpose.msra.mxu0 0.0
        %316 = vmatprep.subr.mxu0 0.0
        %317 = vmatpush1.xpose.msra.mxu0 0.0
        %318 = vmatprep.subr.mxu0 0.0
        %319 = vmatpush1.xpose.msra.mxu0 0.0
        %320 = vmatprep.subr.mxu0 0.0
        %321 = vmatpush1.xpose.msra.mxu0 0.0
        %322 = vmatprep.subr.mxu0 0.0
        %323 = vmatpush1.xpose.msra.mxu0 0.0
        %324 = vmatprep.subr.mxu0 0.0
        %325 = vmatpush1.xpose.msra.mxu0 0.0
        %326 = vmatprep.subr.mxu0 0.0
        %327 = vmatpush1.xpose.msra.mxu0 0.0
        %328 = vmatprep.subr.mxu0 0.0
        %329 = vmatpush1.xpose.msra.mxu0 0.0
        %330 = vmatprep.subr.mxu0 0.0
        %331 = vmatpush1.xpose.msra.mxu0 0.0
        %332 = vmatprep.subr.mxu0 0.0
        %333 = vmatpush1.xpose.msra.mxu0 0.0
        %334 = vmatprep.subr.mxu0 0.0
        %335 = vmatpush1.xpose.msra.mxu0 0.0
        %336 = vmatprep.subr.mxu0 0.0
        %337 = vmatpush1.xpose.msra.mxu0 0.0
        %338 = vmatprep.subr.mxu0 0.0
        %339 = vmatpush1.xpose.msra.mxu0 0.0
        %340 = vmatprep.subr.mxu0 0.0
        %341 = vmatpush1.xpose.msra.mxu0 %v308
        %342 = vmatprep.subr.mxu0 0.0
        %343 = vmatpush2.xpose.msra.mxu0 0.0
        %344 = vmatprep.subr.mxu0 0.0
        %345 = vmatpush2.xpose.msra.mxu0 0.0
        %346 = vmatprep.subr.mxu0 0.0
        %347 = vmatpush2.xpose.msra.mxu0 0.0
        %348 = vmatprep.subr.mxu0 0.0
        %349 = vmatpush2.xpose.msra.mxu0 0.0
        %350 = vmatprep.subr.mxu0 0.0
        %351 = vmatpush2.xpose.msra.mxu0 0.0
        %352 = vmatprep.subr.mxu0 0.0
        %353 = vmatpush2.xpose.msra.mxu0 0.0
        %354 = vmatprep.subr.mxu0 0.0
        %355 = vmatpush2.xpose.msra.mxu0 0.0
        %356 = vmatprep.subr.mxu0 0.0
        %357 = vmatpush2.xpose.msra.mxu0 0.0
        %358 = vmatprep.subr.mxu0 0.0
        %359 = vmatpush2.xpose.msra.mxu0 0.0
        %360 = vmatprep.subr.mxu0 0.0
        %361 = vmatpush2.xpose.msra.mxu0 0.0
        %362 = vmatprep.subr.mxu0 0.0
        %363 = vmatpush2.xpose.msra.mxu0 0.0
        %364 = vmatprep.subr.mxu0 0.0
        %365 = vmatpush2.xpose.msra.mxu0 0.0
        %366 = vmatprep.subr.mxu0 0.0
        %367 = vmatpush2.xpose.msra.mxu0 0.0
        %368 = vmatprep.subr.mxu0 0.0
        %369 = vmatpush2.xpose.msra.mxu0 0.0
        %370 = vmatprep.subr.mxu0 0.0
        %371 = vmatpush2.xpose.msra.mxu0 0.0
        %372 = vmatprep.subr.mxu0 0.0
        %373 = vmatpush2.xpose.msra.mxu0 0.0
        %374 = vmatprep.mubr.f32.mxu0 0.0
        %375 = vmatmul.mubr.f32.gmra.mxu0 %v306
        %v376 = vpop.f32.mrf.mxu0
        %v377 = vadd.f32 0.0, %v376
        %v378 = vpop.f32.mrf.mxu0
        %379 = vdwg.mxu0
        %v381 = vsel %vm202, %v298, 0
        %v383 = vsel %vm202, %v279, 0
        %385 = vmatprep.subr.mxu0 0.0
        %386 = vmatpush1.xpose.msra.mxu0 0.0
        %387 = vmatprep.subr.mxu0 0.0
        %388 = vmatpush1.xpose.msra.mxu0 0.0
        %389 = vmatprep.subr.mxu0 0.0
        %390 = vmatpush1.xpose.msra.mxu0 0.0
        %391 = vmatprep.subr.mxu0 0.0
        %392 = vmatpush1.xpose.msra.mxu0 0.0
        %393 = vmatprep.subr.mxu0 0.0
        %394 = vmatpush1.xpose.msra.mxu0 0.0
        %395 = vmatprep.subr.mxu0 0.0
        %396 = vmatpush1.xpose.msra.mxu0 0.0
        %397 = vmatprep.subr.mxu0 0.0
        %398 = vmatpush1.xpose.msra.mxu0 0.0
        %399 = vmatprep.subr.mxu0 0.0
        %400 = vmatpush1.xpose.msra.mxu0 0.0
        %401 = vmatprep.subr.mxu0 0.0
        %402 = vmatpush1.xpose.msra.mxu0 0.0
        %403 = vmatprep.subr.mxu0 0.0
        %404 = vmatpush1.xpose.msra.mxu0 0.0
        %405 = vmatprep.subr.mxu0 0.0
        %406 = vmatpush1.xpose.msra.mxu0 0.0
        %407 = vmatprep.subr.mxu0 0.0
        %408 = vmatpush1.xpose.msra.mxu0 0.0
        %409 = vmatprep.subr.mxu0 0.0
        %410 = vmatpush1.xpose.msra.mxu0 0.0
        %411 = vmatprep.subr.mxu0 0.0
        %412 = vmatpush1.xpose.msra.mxu0 0.0
        %413 = vmatprep.subr.mxu0 0.0
        %414 = vmatpush1.xpose.msra.mxu0 0.0
        %415 = vmatprep.subr.mxu0 0.0
        %416 = vmatpush1.xpose.msra.mxu0 %v383
        %417 = vmatprep.subr.mxu0 0.0
        %418 = vmatpush2.xpose.msra.mxu0 0.0
        %419 = vmatprep.subr.mxu0 0.0
        %420 = vmatpush2.xpose.msra.mxu0 0.0
        %421 = vmatprep.subr.mxu0 0.0
        %422 = vmatpush2.xpose.msra.mxu0 0.0
        %423 = vmatprep.subr.mxu0 0.0
        %424 = vmatpush2.xpose.msra.mxu0 0.0
        %425 = vmatprep.subr.mxu0 0.0
        %426 = vmatpush2.xpose.msra.mxu0 0.0
        %427 = vmatprep.subr.mxu0 0.0
        %428 = vmatpush2.xpose.msra.mxu0 0.0
        %429 = vmatprep.subr.mxu0 0.0
        %430 = vmatpush2.xpose.msra.mxu0 0.0
        %431 = vmatprep.subr.mxu0 0.0
        %432 = vmatpush2.xpose.msra.mxu0 0.0
        %433 = vmatprep.subr.mxu0 0.0
        %434 = vmatpush2.xpose.msra.mxu0 0.0
        %435 = vmatprep.subr.mxu0 0.0
        %436 = vmatpush2.xpose.msra.mxu0 0.0
        %437 = vmatprep.subr.mxu0 0.0
        %438 = vmatpush2.xpose.msra.mxu0 0.0
        %439 = vmatprep.subr.mxu0 0.0
        %440 = vmatpush2.xpose.msra.mxu0 0.0
        %441 = vmatprep.subr.mxu0 0.0
        %442 = vmatpush2.xpose.msra.mxu0 0.0
        %443 = vmatprep.subr.mxu0 0.0
        %444 = vmatpush2.xpose.msra.mxu0 0.0
        %445 = vmatprep.subr.mxu0 0.0
        %446 = vmatpush2.xpose.msra.mxu0 0.0
        %447 = vmatprep.subr.mxu0 0.0
        %448 = vmatpush2.xpose.msra.mxu0 0.0
        %449 = vmatprep.mubr.f32.mxu0 0.0
        %450 = vmatmul.mubr.f32.gmra.mxu0 %v381
        %v451 = vpop.f32.mrf.mxu0
        %v452 = vadd.f32 0.0, %v451
        %v453 = vpop.f32.mrf.mxu0
        %454 = vdwg.mxu0
        %v456 = vsel %vm202, %v299, 0
        %v458 = vsel %vm202, %v282, 0
        %460 = vmatprep.subr.mxu0 0.0
        %461 = vmatpush1.xpose.msra.mxu0 0.0
        %462 = vmatprep.subr.mxu0 0.0
        %463 = vmatpush1.xpose.msra.mxu0 0.0
        %464 = vmatprep.subr.mxu0 0.0
        %465 = vmatpush1.xpose.msra.mxu0 0.0
        %466 = vmatprep.subr.mxu0 0.0
        %467 = vmatpush1.xpose.msra.mxu0 0.0
        %468 = vmatprep.subr.mxu0 0.0
        %469 = vmatpush1.xpose.msra.mxu0 0.0
        %470 = vmatprep.subr.mxu0 0.0
        %471 = vmatpush1.xpose.msra.mxu0 0.0
        %472 = vmatprep.subr.mxu0 0.0
        %473 = vmatpush1.xpose.msra.mxu0 0.0
        %474 = vmatprep.subr.mxu0 0.0
        %475 = vmatpush1.xpose.msra.mxu0 0.0
        %476 = vmatprep.subr.mxu0 0.0
        %477 = vmatpush1.xpose.msra.mxu0 0.0
        %478 = vmatprep.subr.mxu0 0.0
        %479 = vmatpush1.xpose.msra.mxu0 0.0
        %480 = vmatprep.subr.mxu0 0.0
        %481 = vmatpush1.xpose.msra.mxu0 0.0
        %482 = vmatprep.subr.mxu0 0.0
        %483 = vmatpush1.xpose.msra.mxu0 0.0
        %484 = vmatprep.subr.mxu0 0.0
        %485 = vmatpush1.xpose.msra.mxu0 0.0
        %486 = vmatprep.subr.mxu0 0.0
        %487 = vmatpush1.xpose.msra.mxu0 0.0
        %488 = vmatprep.subr.mxu0 0.0
        %489 = vmatpush1.xpose.msra.mxu0 0.0
        %490 = vmatprep.subr.mxu0 0.0
        %491 = vmatpush1.xpose.msra.mxu0 %v458
        %492 = vmatprep.subr.mxu0 0.0
        %493 = vmatpush2.xpose.msra.mxu0 0.0
        %494 = vmatprep.subr.mxu0 0.0
        %495 = vmatpush2.xpose.msra.mxu0 0.0
        %496 = vmatprep.subr.mxu0 0.0
        %497 = vmatpush2.xpose.msra.mxu0 0.0
        %498 = vmatprep.subr.mxu0 0.0
        %499 = vmatpush2.xpose.msra.mxu0 0.0
        %500 = vmatprep.subr.mxu0 0.0
        %501 = vmatpush2.xpose.msra.mxu0 0.0
        %502 = vmatprep.subr.mxu0 0.0
        %503 = vmatpush2.xpose.msra.mxu0 0.0
        %504 = vmatprep.subr.mxu0 0.0
        %505 = vmatpush2.xpose.msra.mxu0 0.0
        %506 = vmatprep.subr.mxu0 0.0
        %507 = vmatpush2.xpose.msra.mxu0 0.0
        %508 = vmatprep.subr.mxu0 0.0
        %509 = vmatpush2.xpose.msra.mxu0 0.0
        %510 = vmatprep.subr.mxu0 0.0
        %511 = vmatpush2.xpose.msra.mxu0 0.0
        %512 = vmatprep.subr.mxu0 0.0
        %513 = vmatpush2.xpose.msra.mxu0 0.0
        %514 = vmatprep.subr.mxu0 0.0
        %515 = vmatpush2.xpose.msra.mxu0 0.0
        %516 = vmatprep.subr.mxu0 0.0
        %517 = vmatpush2.xpose.msra.mxu0 0.0
        %518 = vmatprep.subr.mxu0 0.0
        %519 = vmatpush2.xpose.msra.mxu0 0.0
        %520 = vmatprep.subr.mxu0 0.0
        %521 = vmatpush2.xpose.msra.mxu0 0.0
        %522 = vmatprep.subr.mxu0 0.0
        %523 = vmatpush2.xpose.msra.mxu0 0.0
        %524 = vmatprep.mubr.f32.mxu0 0.0
        %525 = vmatmul.mubr.f32.gmra.mxu0 %v456
        %v526 = vpop.f32.mrf.mxu0
        %v527 = vadd.f32 0.0, %v526
        %v528 = vpop.f32.mrf.mxu0
        %529 = vdwg.mxu0
        %v531 = vsel %vm202, %v300, 0
        %v533 = vsel %vm202, %v285, 0
        %535 = vmatprep.subr.mxu0 0.0
        %536 = vmatpush1.xpose.msra.mxu0 0.0
        %537 = vmatprep.subr.mxu0 0.0
        %538 = vmatpush1.xpose.msra.mxu0 0.0
        %539 = vmatprep.subr.mxu0 0.0
        %540 = vmatpush1.xpose.msra.mxu0 0.0
        %541 = vmatprep.subr.mxu0 0.0
        %542 = vmatpush1.xpose.msra.mxu0 0.0
        %543 = vmatprep.subr.mxu0 0.0
        %544 = vmatpush1.xpose.msra.mxu0 0.0
        %545 = vmatprep.subr.mxu0 0.0
        %546 = vmatpush1.xpose.msra.mxu0 0.0
        %547 = vmatprep.subr.mxu0 0.0
        %548 = vmatpush1.xpose.msra.mxu0 0.0
        %549 = vmatprep.subr.mxu0 0.0
        %550 = vmatpush1.xpose.msra.mxu0 0.0
        %551 = vmatprep.subr.mxu0 0.0
        %552 = vmatpush1.xpose.msra.mxu0 0.0
        %553 = vmatprep.subr.mxu0 0.0
        %554 = vmatpush1.xpose.msra.mxu0 0.0
        %555 = vmatprep.subr.mxu0 0.0
        %556 = vmatpush1.xpose.msra.mxu0 0.0
        %557 = vmatprep.subr.mxu0 0.0
        %558 = vmatpush1.xpose.msra.mxu0 0.0
        %559 = vmatprep.subr.mxu0 0.0
        %560 = vmatpush1.xpose.msra.mxu0 0.0
        %561 = vmatprep.subr.mxu0 0.0
        %562 = vmatpush1.xpose.msra.mxu0 0.0
        %563 = vmatprep.subr.mxu0 0.0
        %564 = vmatpush1.xpose.msra.mxu0 0.0
        %565 = vmatprep.subr.mxu0 0.0
        %566 = vmatpush1.xpose.msra.mxu0 %v533
        %567 = vmatprep.subr.mxu0 0.0
        %568 = vmatpush2.xpose.msra.mxu0 0.0
        %569 = vmatprep.subr.mxu0 0.0
        %570 = vmatpush2.xpose.msra.mxu0 0.0
        %571 = vmatprep.subr.mxu0 0.0
        %572 = vmatpush2.xpose.msra.mxu0 0.0
        %573 = vmatprep.subr.mxu0 0.0
        %574 = vmatpush2.xpose.msra.mxu0 0.0
        %575 = vmatprep.subr.mxu0 0.0
        %576 = vmatpush2.xpose.msra.mxu0 0.0
        %577 = vmatprep.subr.mxu0 0.0
        %578 = vmatpush2.xpose.msra.mxu0 0.0
        %579 = vmatprep.subr.mxu0 0.0
        %580 = vmatpush2.xpose.msra.mxu0 0.0
        %581 = vmatprep.subr.mxu0 0.0
        %582 = vmatpush2.xpose.msra.mxu0 0.0
        %583 = vmatprep.subr.mxu0 0.0
        %584 = vmatpush2.xpose.msra.mxu0 0.0
        %585 = vmatprep.subr.mxu0 0.0
        %586 = vmatpush2.xpose.msra.mxu0 0.0
        %587 = vmatprep.subr.mxu0 0.0
        %588 = vmatpush2.xpose.msra.mxu0 0.0
        %589 = vmatprep.subr.mxu0 0.0
        %590 = vmatpush2.xpose.msra.mxu0 0.0
        %591 = vmatprep.subr.mxu0 0.0
        %592 = vmatpush2.xpose.msra.mxu0 0.0
        %593 = vmatprep.subr.mxu0 0.0
        %594 = vmatpush2.xpose.msra.mxu0 0.0
        %595 = vmatprep.subr.mxu0 0.0
        %596 = vmatpush2.xpose.msra.mxu0 0.0
        %597 = vmatprep.subr.mxu0 0.0
        %598 = vmatpush2.xpose.msra.mxu0 0.0
        %599 = vmatprep.mubr.f32.mxu0 0.0
        %600 = vmatmul.mubr.f32.gmra.mxu0 %v531
        %v601 = vpop.f32.mrf.mxu0
        %v602 = vadd.f32 0.0, %v601
        %v603 = vpop.f32.mrf.mxu0
        %604 = vdwg.mxu0
        %v606 = vsel %vm202, %v301, 0
        %v608 = vsel %vm202, %v275, 0
        %610 = vmatprep.subr.mxu0 0.0
        %611 = vmatpush1.xpose.msra.mxu0 0.0
        %612 = vmatprep.subr.mxu0 0.0
        %613 = vmatpush1.xpose.msra.mxu0 0.0
        %614 = vmatprep.subr.mxu0 0.0
        %615 = vmatpush1.xpose.msra.mxu0 0.0
        %616 = vmatprep.subr.mxu0 0.0
        %617 = vmatpush1.xpose.msra.mxu0 0.0
        %618 = vmatprep.subr.mxu0 0.0
        %619 = vmatpush1.xpose.msra.mxu0 0.0
        %620 = vmatprep.subr.mxu0 0.0
        %621 = vmatpush1.xpose.msra.mxu0 0.0
        %622 = vmatprep.subr.mxu0 0.0
        %623 = vmatpush1.xpose.msra.mxu0 0.0
        %624 = vmatprep.subr.mxu0 0.0
        %625 = vmatpush1.xpose.msra.mxu0 0.0
        %626 = vmatprep.subr.mxu0 0.0
        %627 = vmatpush1.xpose.msra.mxu0 0.0
        %628 = vmatprep.subr.mxu0 0.0
        %629 = vmatpush1.xpose.msra.mxu0 0.0
        %630 = vmatprep.subr.mxu0 0.0
        %631 = vmatpush1.xpose.msra.mxu0 0.0
        %632 = vmatprep.subr.mxu0 0.0
        %633 = vmatpush1.xpose.msra.mxu0 0.0
        %634 = vmatprep.subr.mxu0 0.0
        %635 = vmatpush1.xpose.msra.mxu0 0.0
        %636 = vmatprep.subr.mxu0 0.0
        %637 = vmatpush1.xpose.msra.mxu0 0.0
        %638 = vmatprep.subr.mxu0 0.0
        %639 = vmatpush1.xpose.msra.mxu0 0.0
        %640 = vmatprep.subr.mxu0 0.0
        %641 = vmatpush1.xpose.msra.mxu0 %v608
        %642 = vmatprep.subr.mxu0 0.0
        %643 = vmatpush2.xpose.msra.mxu0 0.0
        %644 = vmatprep.subr.mxu0 0.0
        %645 = vmatpush2.xpose.msra.mxu0 0.0
        %646 = vmatprep.subr.mxu0 0.0
        %647 = vmatpush2.xpose.msra.mxu0 0.0
        %648 = vmatprep.subr.mxu0 0.0
        %649 = vmatpush2.xpose.msra.mxu0 0.0
        %650 = vmatprep.subr.mxu0 0.0
        %651 = vmatpush2.xpose.msra.mxu0 0.0
        %652 = vmatprep.subr.mxu0 0.0
        %653 = vmatpush2.xpose.msra.mxu0 0.0
        %654 = vmatprep.subr.mxu0 0.0
        %655 = vmatpush2.xpose.msra.mxu0 0.0
        %656 = vmatprep.subr.mxu0 0.0
        %657 = vmatpush2.xpose.msra.mxu0 0.0
        %658 = vmatprep.subr.mxu0 0.0
        %659 = vmatpush2.xpose.msra.mxu0 0.0
        %660 = vmatprep.subr.mxu0 0.0
        %661 = vmatpush2.xpose.msra.mxu0 0.0
        %662 = vmatprep.subr.mxu0 0.0
        %663 = vmatpush2.xpose.msra.mxu0 0.0
        %664 = vmatprep.subr.mxu0 0.0
        %665 = vmatpush2.xpose.msra.mxu0 0.0
        %666 = vmatprep.subr.mxu0 0.0
        %667 = vmatpush2.xpose.msra.mxu0 0.0
        %668 = vmatprep.subr.mxu0 0.0
        %669 = vmatpush2.xpose.msra.mxu0 0.0
        %670 = vmatprep.subr.mxu0 0.0
        %671 = vmatpush2.xpose.msra.mxu0 0.0
        %672 = vmatprep.subr.mxu0 0.0
        %673 = vmatpush2.xpose.msra.mxu0 0.0
        %674 = vmatprep.mubr.f32.mxu0 0.0
        %675 = vmatmul.mubr.f32.gmra.mxu0 %v606
        %v676 = vpop.f32.mrf.mxu0
        %v677 = vadd.f32 0.0, %v676
        %v678 = vpop.f32.mrf.mxu0
        %679 = vdwg.mxu0
        %v681 = vsel %vm202, %v302, 0
        %v683 = vsel %vm202, %v289, 0
        %685 = vmatprep.subr.mxu0 0.0
        %686 = vmatpush1.xpose.msra.mxu0 0.0
        %687 = vmatprep.subr.mxu0 0.0
        %688 = vmatpush1.xpose.msra.mxu0 0.0
        %689 = vmatprep.subr.mxu0 0.0
        %690 = vmatpush1.xpose.msra.mxu0 0.0
        %691 = vmatprep.subr.mxu0 0.0
        %692 = vmatpush1.xpose.msra.mxu0 0.0
        %693 = vmatprep.subr.mxu0 0.0
        %694 = vmatpush1.xpose.msra.mxu0 0.0
        %695 = vmatprep.subr.mxu0 0.0
        %696 = vmatpush1.xpose.msra.mxu0 0.0
        %697 = vmatprep.subr.mxu0 0.0
        %698 = vmatpush1.xpose.msra.mxu0 0.0
        %699 = vmatprep.subr.mxu0 0.0
        %700 = vmatpush1.xpose.msra.mxu0 0.0
        %701 = vmatprep.subr.mxu0 0.0
        %702 = vmatpush1.xpose.msra.mxu0 0.0
        %703 = vmatprep.subr.mxu0 0.0
        %704 = vmatpush1.xpose.msra.mxu0 0.0
        %705 = vmatprep.subr.mxu0 0.0
        %706 = vmatpush1.xpose.msra.mxu0 0.0
        %707 = vmatprep.subr.mxu0 0.0
        %708 = vmatpush1.xpose.msra.mxu0 0.0
        %709 = vmatprep.subr.mxu0 0.0
        %710 = vmatpush1.xpose.msra.mxu0 0.0
        %711 = vmatprep.subr.mxu0 0.0
        %712 = vmatpush1.xpose.msra.mxu0 0.0
        %713 = vmatprep.subr.mxu0 0.0
        %714 = vmatpush1.xpose.msra.mxu0 0.0
        %715 = vmatprep.subr.mxu0 0.0
        %716 = vmatpush1.xpose.msra.mxu0 %v683
        %717 = vmatprep.subr.mxu0 0.0
        %718 = vmatpush2.xpose.msra.mxu0 0.0
        %719 = vmatprep.subr.mxu0 0.0
        %720 = vmatpush2.xpose.msra.mxu0 0.0
        %721 = vmatprep.subr.mxu0 0.0
        %722 = vmatpush2.xpose.msra.mxu0 0.0
        %723 = vmatprep.subr.mxu0 0.0
        %724 = vmatpush2.xpose.msra.mxu0 0.0
        %725 = vmatprep.subr.mxu0 0.0
        %726 = vmatpush2.xpose.msra.mxu0 0.0
        %727 = vmatprep.subr.mxu0 0.0
        %728 = vmatpush2.xpose.msra.mxu0 0.0
        %729 = vmatprep.subr.mxu0 0.0
        %730 = vmatpush2.xpose.msra.mxu0 0.0
        %731 = vmatprep.subr.mxu0 0.0
        %732 = vmatpush2.xpose.msra.mxu0 0.0
        %733 = vmatprep.subr.mxu0 0.0
        %734 = vmatpush2.xpose.msra.mxu0 0.0
        %735 = vmatprep.subr.mxu0 0.0
        %736 = vmatpush2.xpose.msra.mxu0 0.0
        %737 = vmatprep.subr.mxu0 0.0
        %738 = vmatpush2.xpose.msra.mxu0 0.0
        %739 = vmatprep.subr.mxu0 0.0
        %740 = vmatpush2.xpose.msra.mxu0 0.0
        %741 = vmatprep.subr.mxu0 0.0
        %742 = vmatpush2.xpose.msra.mxu0 0.0
        %743 = vmatprep.subr.mxu0 0.0
        %744 = vmatpush2.xpose.msra.mxu0 0.0
        %745 = vmatprep.subr.mxu0 0.0
        %746 = vmatpush2.xpose.msra.mxu0 0.0
        %747 = vmatprep.subr.mxu0 0.0
        %748 = vmatpush2.xpose.msra.mxu0 0.0
        %749 = vmatprep.mubr.f32.mxu0 0.0
        %750 = vmatmul.mubr.f32.gmra.mxu0 %v681
        %v751 = vpop.f32.mrf.mxu0
        %v752 = vadd.f32 0.0, %v751
        %v753 = vpop.f32.mrf.mxu0
        %754 = vdwg.mxu0
        %v756 = vsel %vm202, %v303, 0
        %v758 = vsel %vm202, %v292, 0
        %760 = vmatprep.subr.mxu0 0.0
        %761 = vmatpush1.xpose.msra.mxu0 0.0
        %762 = vmatprep.subr.mxu0 0.0
        %763 = vmatpush1.xpose.msra.mxu0 0.0
        %764 = vmatprep.subr.mxu0 0.0
        %765 = vmatpush1.xpose.msra.mxu0 0.0
        %766 = vmatprep.subr.mxu0 0.0
        %767 = vmatpush1.xpose.msra.mxu0 0.0
        %768 = vmatprep.subr.mxu0 0.0
        %769 = vmatpush1.xpose.msra.mxu0 0.0
        %770 = vmatprep.subr.mxu0 0.0
        %771 = vmatpush1.xpose.msra.mxu0 0.0
        %772 = vmatprep.subr.mxu0 0.0
        %773 = vmatpush1.xpose.msra.mxu0 0.0
        %774 = vmatprep.subr.mxu0 0.0
        %775 = vmatpush1.xpose.msra.mxu0 0.0
        %776 = vmatprep.subr.mxu0 0.0
        %777 = vmatpush1.xpose.msra.mxu0 0.0
        %778 = vmatprep.subr.mxu0 0.0
        %779 = vmatpush1.xpose.msra.mxu0 0.0
        %780 = vmatprep.subr.mxu0 0.0
        %781 = vmatpush1.xpose.msra.mxu0 0.0
        %782 = vmatprep.subr.mxu0 0.0
        %783 = vmatpush1.xpose.msra.mxu0 0.0
        %784 = vmatprep.subr.mxu0 0.0
        %785 = vmatpush1.xpose.msra.mxu0 0.0
        %786 = vmatprep.subr.mxu0 0.0
        %787 = vmatpush1.xpose.msra.mxu0 0.0
        %788 = vmatprep.subr.mxu0 0.0
        %789 = vmatpush1.xpose.msra.mxu0 0.0
        %790 = vmatprep.subr.mxu0 0.0
        %791 = vmatpush1.xpose.msra.mxu0 %v758
        %792 = vmatprep.subr.mxu0 0.0
        %793 = vmatpush2.xpose.msra.mxu0 0.0
        %794 = vmatprep.subr.mxu0 0.0
        %795 = vmatpush2.xpose.msra.mxu0 0.0
        %796 = vmatprep.subr.mxu0 0.0
        %797 = vmatpush2.xpose.msra.mxu0 0.0
        %798 = vmatprep.subr.mxu0 0.0
        %799 = vmatpush2.xpose.msra.mxu0 0.0
        %800 = vmatprep.subr.mxu0 0.0
        %801 = vmatpush2.xpose.msra.mxu0 0.0
        %802 = vmatprep.subr.mxu0 0.0
        %803 = vmatpush2.xpose.msra.mxu0 0.0
        %804 = vmatprep.subr.mxu0 0.0
        %805 = vmatpush2.xpose.msra.mxu0 0.0
        %806 = vmatprep.subr.mxu0 0.0
        %807 = vmatpush2.xpose.msra.mxu0 0.0
        %808 = vmatprep.subr.mxu0 0.0
        %809 = vmatpush2.xpose.msra.mxu0 0.0
        %810 = vmatprep.subr.mxu0 0.0
        %811 = vmatpush2.xpose.msra.mxu0 0.0
        %812 = vmatprep.subr.mxu0 0.0
        %813 = vmatpush2.xpose.msra.mxu0 0.0
        %814 = vmatprep.subr.mxu0 0.0
        %815 = vmatpush2.xpose.msra.mxu0 0.0
        %816 = vmatprep.subr.mxu0 0.0
        %817 = vmatpush2.xpose.msra.mxu0 0.0
        %818 = vmatprep.subr.mxu0 0.0
        %819 = vmatpush2.xpose.msra.mxu0 0.0
        %820 = vmatprep.subr.mxu0 0.0
        %821 = vmatpush2.xpose.msra.mxu0 0.0
        %822 = vmatprep.subr.mxu0 0.0
        %823 = vmatpush2.xpose.msra.mxu0 0.0
        %824 = vmatprep.mubr.f32.mxu0 0.0
        %825 = vmatmul.mubr.f32.gmra.mxu0 %v756
        %v826 = vpop.f32.mrf.mxu0
        %v827 = vadd.f32 0.0, %v826
        %v828 = vpop.f32.mrf.mxu0
        %829 = vdwg.mxu0
        %v831 = vsel %vm202, %v304, 0
        %v833 = vsel %vm202, %v295, 0
        %835 = vmatprep.subr.mxu0 0.0
        %836 = vmatpush1.xpose.msra.mxu0 0.0
        %837 = vmatprep.subr.mxu0 0.0
        %838 = vmatpush1.xpose.msra.mxu0 0.0
        %839 = vmatprep.subr.mxu0 0.0
        %840 = vmatpush1.xpose.msra.mxu0 0.0
        %841 = vmatprep.subr.mxu0 0.0
        %842 = vmatpush1.xpose.msra.mxu0 0.0
        %843 = vmatprep.subr.mxu0 0.0
        %844 = vmatpush1.xpose.msra.mxu0 0.0
        %845 = vmatprep.subr.mxu0 0.0
        %846 = vmatpush1.xpose.msra.mxu0 0.0
        %847 = vmatprep.subr.mxu0 0.0
        %848 = vmatpush1.xpose.msra.mxu0 0.0
        %849 = vmatprep.subr.mxu0 0.0
        %850 = vmatpush1.xpose.msra.mxu0 0.0
        %851 = vmatprep.subr.mxu0 0.0
        %852 = vmatpush1.xpose.msra.mxu0 0.0
        %853 = vmatprep.subr.mxu0 0.0
        %854 = vmatpush1.xpose.msra.mxu0 0.0
        %855 = vmatprep.subr.mxu0 0.0
        %856 = vmatpush1.xpose.msra.mxu0 0.0
        %857 = vmatprep.subr.mxu0 0.0
        %858 = vmatpush1.xpose.msra.mxu0 0.0
        %859 = vmatprep.subr.mxu0 0.0
        %860 = vmatpush1.xpose.msra.mxu0 0.0
        %861 = vmatprep.subr.mxu0 0.0
        %862 = vmatpush1.xpose.msra.mxu0 0.0
        %863 = vmatprep.subr.mxu0 0.0
        %864 = vmatpush1.xpose.msra.mxu0 0.0
        %865 = vmatprep.subr.mxu0 0.0
        %866 = vmatpush1.xpose.msra.mxu0 %v833
        %867 = vmatprep.subr.mxu0 0.0
        %868 = vmatpush2.xpose.msra.mxu0 0.0
        %869 = vmatprep.subr.mxu0 0.0
        %870 = vmatpush2.xpose.msra.mxu0 0.0
        %871 = vmatprep.subr.mxu0 0.0
        %872 = vmatpush2.xpose.msra.mxu0 0.0
        %873 = vmatprep.subr.mxu0 0.0
        %874 = vmatpush2.xpose.msra.mxu0 0.0
        %875 = vmatprep.subr.mxu0 0.0
        %876 = vmatpush2.xpose.msra.mxu0 0.0
        %877 = vmatprep.subr.mxu0 0.0
        %878 = vmatpush2.xpose.msra.mxu0 0.0
        %879 = vmatprep.subr.mxu0 0.0
        %880 = vmatpush2.xpose.msra.mxu0 0.0
        %881 = vmatprep.subr.mxu0 0.0
        %882 = vmatpush2.xpose.msra.mxu0 0.0
        %883 = vmatprep.subr.mxu0 0.0
        %884 = vmatpush2.xpose.msra.mxu0 0.0
        %885 = vmatprep.subr.mxu0 0.0
        %886 = vmatpush2.xpose.msra.mxu0 0.0
        %887 = vmatprep.subr.mxu0 0.0
        %888 = vmatpush2.xpose.msra.mxu0 0.0
        %889 = vmatprep.subr.mxu0 0.0
        %890 = vmatpush2.xpose.msra.mxu0 0.0
        %891 = vmatprep.subr.mxu0 0.0
        %892 = vmatpush2.xpose.msra.mxu0 0.0
        %893 = vmatprep.subr.mxu0 0.0
        %894 = vmatpush2.xpose.msra.mxu0 0.0
        %895 = vmatprep.subr.mxu0 0.0
        %896 = vmatpush2.xpose.msra.mxu0 0.0
        %897 = vmatprep.subr.mxu0 0.0
        %898 = vmatpush2.xpose.msra.mxu0 0.0
        %899 = vmatprep.mubr.f32.mxu0 0.0
        %900 = vmatmul.mubr.f32.gmra.mxu0 %v831
        %v901 = vpop.f32.mrf.mxu0
        %v902 = vadd.f32 0.0, %v901
        %v903 = vpop.f32.mrf.mxu0
        %904 = vdwg.mxu0
        %vm905 = vcmask 64512
        %v906 = vsel %vm905, %v377, -inf
        %907 = vmax.xlane.f32.xlu0 %v906
        %v908 = vpop.xlane.xlu0 %907
        %v909 = vsel %vm905, %v452, -inf
        %910 = vmax.xlane.f32.xlu0 %v909
        %v911 = vpop.xlane.xlu0 %910
        %v912 = vsel %vm905, %v527, -inf
        %913 = vmax.xlane.f32.xlu0 %v912
        %v914 = vpop.xlane.xlu0 %913
        %v915 = vsel %vm905, %v602, -inf
        %916 = vmax.xlane.f32.xlu0 %v915
        %v917 = vpop.xlane.xlu0 %916
        %v918 = vsel %vm905, %v677, -inf
        %919 = vmax.xlane.f32.xlu0 %v918
        %v920 = vpop.xlane.xlu0 %919
        %v921 = vsel %vm905, %v752, -inf
        %922 = vmax.xlane.f32.xlu0 %v921
        %v923 = vpop.xlane.xlu0 %922
        %v924 = vsel %vm905, %v827, -inf
        %925 = vmax.xlane.f32.xlu0 %v924
        %v926 = vpop.xlane.xlu0 %925
        %v927 = vsel %vm905, %v902, -inf
        %928 = vmax.xlane.f32.xlu0 %v927
        %v929 = vpop.xlane.xlu0 %928
        %v930 = vsub.f32 %v377, %v908
        %v931 = vsub.f32 %v452, %v911
        %v932 = vsub.f32 %v527, %v914
        %v933 = vsub.f32 %v602, %v917
        %v934 = vsub.f32 %v677, %v920
        %v935 = vsub.f32 %v752, %v923
        %v936 = vsub.f32 %v827, %v926
        %v937 = vsub.f32 %v902, %v929
        %v938 = vmul.f32 %v930, 1.442695
        %v939 = vpow.pop %v938
        %v940 = vmul.f32 %v931, 1.442695
        %v941 = vpow.pop %v940
        %v942 = vmul.f32 %v932, 1.442695
        %v943 = vpow.pop %v942
        %v944 = vmul.f32 %v933, 1.442695
        %v945 = vpow.pop %v944
        %v946 = vmul.f32 %v934, 1.442695
        %v947 = vpow.pop %v946
        %v948 = vmul.f32 %v935, 1.442695
        %v949 = vpow.pop %v948
        %v950 = vmul.f32 %v936, 1.442695
        %v951 = vpow.pop %v950
        %v952 = vmul.f32 %v937, 1.442695
        %v953 = vpow.pop %v952
        %v954 = vsel %vm905, %v939, 0.0
        %955 = vadd.xlane.f32.xlu0 %v954
        %v956 = vpop.xlane.xlu0 %955
        %v957 = vsel %vm905, %v941, 0.0
        %958 = vadd.xlane.f32.xlu0 %v957
        %v959 = vpop.xlane.xlu0 %958
        %v960 = vsel %vm905, %v943, 0.0
        %961 = vadd.xlane.f32.xlu0 %v960
        %v962 = vpop.xlane.xlu0 %961
        %v963 = vsel %vm905, %v945, 0.0
        %964 = vadd.xlane.f32.xlu0 %v963
        %v965 = vpop.xlane.xlu0 %964
        %v966 = vsel %vm905, %v947, 0.0
        %967 = vadd.xlane.f32.xlu0 %v966
        %v968 = vpop.xlane.xlu0 %967
        %v969 = vsel %vm905, %v949, 0.0
        %970 = vadd.xlane.f32.xlu0 %v969
        %v971 = vpop.xlane.xlu0 %970
        %v972 = vsel %vm905, %v951, 0.0
        %973 = vadd.xlane.f32.xlu0 %v972
        %v974 = vpop.xlane.xlu0 %973
        %v975 = vsel %vm905, %v953, 0.0
        %976 = vadd.xlane.f32.xlu0 %v975
        %v977 = vpop.xlane.xlu0 %976
        %v979 = vsel %vm905, %v939, 0
        %981 = vmatprep.subr.mxu0 0.0
        %982 = vmatpush1.msra.mxu0 0.0
        %983 = vmatprep.subr.mxu0 0.0
        %984 = vmatpush1.msra.mxu0 0.0
        %985 = vmatprep.subr.mxu0 0.0
        %986 = vmatpush1.msra.mxu0 0.0
        %987 = vmatprep.subr.mxu0 0.0
        %988 = vmatpush1.msra.mxu0 0.0
        %989 = vmatprep.subr.mxu0 0.0
        %990 = vmatpush1.msra.mxu0 0.0
        %991 = vmatprep.subr.mxu0 0.0
        %992 = vmatpush1.msra.mxu0 0.0
        %993 = vmatprep.subr.mxu0 0.0
        %994 = vmatpush1.msra.mxu0 0.0
        %995 = vmatprep.subr.mxu0 0.0
        %996 = vmatpush1.msra.mxu0 0.0
        %997 = vmatprep.subr.mxu0 0.0
        %998 = vmatpush1.msra.mxu0 0.0
        %999 = vmatprep.subr.mxu0 0.0
        %1000 = vmatpush1.msra.mxu0 0.0
        %1001 = vmatprep.subr.mxu0 0.0
        %1002 = vmatpush1.msra.mxu0 0.0
        %1003 = vmatprep.subr.mxu0 0.0
        %1004 = vmatpush1.msra.mxu0 0.0
        %1005 = vmatprep.subr.mxu0 0.0
        %1006 = vmatpush1.msra.mxu0 0.0
        %1007 = vmatprep.subr.mxu0 0.0
        %1008 = vmatpush1.msra.mxu0 0.0
        %1009 = vmatprep.subr.mxu0 0.0
        %1010 = vmatpush1.msra.mxu0 0.0
        %1011 = vmatprep.subr.mxu0 0.0
        %1012 = vmatpush1.msra.mxu0 %v273
        %1013 = vmatprep.subr.mxu0 0.0
        %1014 = vmatpush2.msra.mxu0 0.0
        %1015 = vmatprep.subr.mxu0 0.0
        %1016 = vmatpush2.msra.mxu0 0.0
        %1017 = vmatprep.subr.mxu0 0.0
        %1018 = vmatpush2.msra.mxu0 0.0
        %1019 = vmatprep.subr.mxu0 0.0
        %1020 = vmatpush2.msra.mxu0 0.0
        %1021 = vmatprep.subr.mxu0 0.0
        %1022 = vmatpush2.msra.mxu0 0.0
        %1023 = vmatprep.subr.mxu0 0.0
        %1024 = vmatpush2.msra.mxu0 0.0
        %1025 = vmatprep.subr.mxu0 0.0
        %1026 = vmatpush2.msra.mxu0 0.0
        %1027 = vmatprep.subr.mxu0 0.0
        %1028 = vmatpush2.msra.mxu0 0.0
        %1029 = vmatprep.subr.mxu0 0.0
        %1030 = vmatpush2.msra.mxu0 0.0
        %1031 = vmatprep.subr.mxu0 0.0
        %1032 = vmatpush2.msra.mxu0 0.0
        %1033 = vmatprep.subr.mxu0 0.0
        %1034 = vmatpush2.msra.mxu0 0.0
        %1035 = vmatprep.subr.mxu0 0.0
        %1036 = vmatpush2.msra.mxu0 0.0
        %1037 = vmatprep.subr.mxu0 0.0
        %1038 = vmatpush2.msra.mxu0 0.0
        %1039 = vmatprep.subr.mxu0 0.0
        %1040 = vmatpush2.msra.mxu0 0.0
        %1041 = vmatprep.subr.mxu0 0.0
        %1042 = vmatpush2.msra.mxu0 0.0
        %1043 = vmatprep.subr.mxu0 0.0
        %1044 = vmatpush2.msra.mxu0 0.0
        %1045 = vmatprep.mubr.f32.mxu0 0.0
        %1046 = vmatmul.mubr.f32.gmra.mxu0 %v979
        %v1047 = vpop.f32.mrf.mxu0
        %v1048 = vadd.f32 0.0, %v1047
        %v1049 = vpop.f32.mrf.mxu0
        %1050 = vdwg.mxu0
        %v1052 = vsel %vm905, %v941, 0
        %1054 = vmatprep.subr.mxu0 0.0
        %1055 = vmatpush1.msra.mxu0 0.0
        %1056 = vmatprep.subr.mxu0 0.0
        %1057 = vmatpush1.msra.mxu0 0.0
        %1058 = vmatprep.subr.mxu0 0.0
        %1059 = vmatpush1.msra.mxu0 0.0
        %1060 = vmatprep.subr.mxu0 0.0
        %1061 = vmatpush1.msra.mxu0 0.0
        %1062 = vmatprep.subr.mxu0 0.0
        %1063 = vmatpush1.msra.mxu0 0.0
        %1064 = vmatprep.subr.mxu0 0.0
        %1065 = vmatpush1.msra.mxu0 0.0
        %1066 = vmatprep.subr.mxu0 0.0
        %1067 = vmatpush1.msra.mxu0 0.0
        %1068 = vmatprep.subr.mxu0 0.0
        %1069 = vmatpush1.msra.mxu0 0.0
        %1070 = vmatprep.subr.mxu0 0.0
        %1071 = vmatpush1.msra.mxu0 0.0
        %1072 = vmatprep.subr.mxu0 0.0
        %1073 = vmatpush1.msra.mxu0 0.0
        %1074 = vmatprep.subr.mxu0 0.0
        %1075 = vmatpush1.msra.mxu0 0.0
        %1076 = vmatprep.subr.mxu0 0.0
        %1077 = vmatpush1.msra.mxu0 0.0
        %1078 = vmatprep.subr.mxu0 0.0
        %1079 = vmatpush1.msra.mxu0 0.0
        %1080 = vmatprep.subr.mxu0 0.0
        %1081 = vmatpush1.msra.mxu0 0.0
        %1082 = vmatprep.subr.mxu0 0.0
        %1083 = vmatpush1.msra.mxu0 0.0
        %1084 = vmatprep.subr.mxu0 0.0
        %1085 = vmatpush1.msra.mxu0 %v279
        %1086 = vmatprep.subr.mxu0 0.0
        %1087 = vmatpush2.msra.mxu0 0.0
        %1088 = vmatprep.subr.mxu0 0.0
        %1089 = vmatpush2.msra.mxu0 0.0
        %1090 = vmatprep.subr.mxu0 0.0
        %1091 = vmatpush2.msra.mxu0 0.0
        %1092 = vmatprep.subr.mxu0 0.0
        %1093 = vmatpush2.msra.mxu0 0.0
        %1094 = vmatprep.subr.mxu0 0.0
        %1095 = vmatpush2.msra.mxu0 0.0
        %1096 = vmatprep.subr.mxu0 0.0
        %1097 = vmatpush2.msra.mxu0 0.0
        %1098 = vmatprep.subr.mxu0 0.0
        %1099 = vmatpush2.msra.mxu0 0.0
        %1100 = vmatprep.subr.mxu0 0.0
        %1101 = vmatpush2.msra.mxu0 0.0
        %1102 = vmatprep.subr.mxu0 0.0
        %1103 = vmatpush2.msra.mxu0 0.0
        %1104 = vmatprep.subr.mxu0 0.0
        %1105 = vmatpush2.msra.mxu0 0.0
        %1106 = vmatprep.subr.mxu0 0.0
        %1107 = vmatpush2.msra.mxu0 0.0
        %1108 = vmatprep.subr.mxu0 0.0
        %1109 = vmatpush2.msra.mxu0 0.0
        %1110 = vmatprep.subr.mxu0 0.0
        %1111 = vmatpush2.msra.mxu0 0.0
        %1112 = vmatprep.subr.mxu0 0.0
        %1113 = vmatpush2.msra.mxu0 0.0
        %1114 = vmatprep.subr.mxu0 0.0
        %1115 = vmatpush2.msra.mxu0 0.0
        %1116 = vmatprep.subr.mxu0 0.0
        %1117 = vmatpush2.msra.mxu0 0.0
        %1118 = vmatprep.mubr.f32.mxu0 0.0
        %1119 = vmatmul.mubr.f32.gmra.mxu0 %v1052
        %v1120 = vpop.f32.mrf.mxu0
        %v1121 = vadd.f32 0.0, %v1120
        %v1122 = vpop.f32.mrf.mxu0
        %1123 = vdwg.mxu0
        %v1125 = vsel %vm905, %v943, 0
        %1127 = vmatprep.subr.mxu0 0.0
        %1128 = vmatpush1.msra.mxu0 0.0
        %1129 = vmatprep.subr.mxu0 0.0
        %1130 = vmatpush1.msra.mxu0 0.0
        %1131 = vmatprep.subr.mxu0 0.0
        %1132 = vmatpush1.msra.mxu0 0.0
        %1133 = vmatprep.subr.mxu0 0.0
        %1134 = vmatpush1.msra.mxu0 0.0
        %1135 = vmatprep.subr.mxu0 0.0
        %1136 = vmatpush1.msra.mxu0 0.0
        %1137 = vmatprep.subr.mxu0 0.0
        %1138 = vmatpush1.msra.mxu0 0.0
        %1139 = vmatprep.subr.mxu0 0.0
        %1140 = vmatpush1.msra.mxu0 0.0
        %1141 = vmatprep.subr.mxu0 0.0
        %1142 = vmatpush1.msra.mxu0 0.0
        %1143 = vmatprep.subr.mxu0 0.0
        %1144 = vmatpush1.msra.mxu0 0.0
        %1145 = vmatprep.subr.mxu0 0.0
        %1146 = vmatpush1.msra.mxu0 0.0
        %1147 = vmatprep.subr.mxu0 0.0
        %1148 = vmatpush1.msra.mxu0 0.0
        %1149 = vmatprep.subr.mxu0 0.0
        %1150 = vmatpush1.msra.mxu0 0.0
        %1151 = vmatprep.subr.mxu0 0.0
        %1152 = vmatpush1.msra.mxu0 0.0
        %1153 = vmatprep.subr.mxu0 0.0
        %1154 = vmatpush1.msra.mxu0 0.0
        %1155 = vmatprep.subr.mxu0 0.0
        %1156 = vmatpush1.msra.mxu0 0.0
        %1157 = vmatprep.subr.mxu0 0.0
        %1158 = vmatpush1.msra.mxu0 %v282
        %1159 = vmatprep.subr.mxu0 0.0
        %1160 = vmatpush2.msra.mxu0 0.0
        %1161 = vmatprep.subr.mxu0 0.0
        %1162 = vmatpush2.msra.mxu0 0.0
        %1163 = vmatprep.subr.mxu0 0.0
        %1164 = vmatpush2.msra.mxu0 0.0
        %1165 = vmatprep.subr.mxu0 0.0
        %1166 = vmatpush2.msra.mxu0 0.0
        %1167 = vmatprep.subr.mxu0 0.0
        %1168 = vmatpush2.msra.mxu0 0.0
        %1169 = vmatprep.subr.mxu0 0.0
        %1170 = vmatpush2.msra.mxu0 0.0
        %1171 = vmatprep.subr.mxu0 0.0
        %1172 = vmatpush2.msra.mxu0 0.0
        %1173 = vmatprep.subr.mxu0 0.0
        %1174 = vmatpush2.msra.mxu0 0.0
        %1175 = vmatprep.subr.mxu0 0.0
        %1176 = vmatpush2.msra.mxu0 0.0
        %1177 = vmatprep.subr.mxu0 0.0
        %1178 = vmatpush2.msra.mxu0 0.0
        %1179 = vmatprep.subr.mxu0 0.0
        %1180 = vmatpush2.msra.mxu0 0.0
        %1181 = vmatprep.subr.mxu0 0.0
        %1182 = vmatpush2.msra.mxu0 0.0
        %1183 = vmatprep.subr.mxu0 0.0
        %1184 = vmatpush2.msra.mxu0 0.0
        %1185 = vmatprep.subr.mxu0 0.0
        %1186 = vmatpush2.msra.mxu0 0.0
        %1187 = vmatprep.subr.mxu0 0.0
        %1188 = vmatpush2.msra.mxu0 0.0
        %1189 = vmatprep.subr.mxu0 0.0
        %1190 = vmatpush2.msra.mxu0 0.0
        %1191 = vmatprep.mubr.f32.mxu0 0.0
        %1192 = vmatmul.mubr.f32.gmra.mxu0 %v1125
        %v1193 = vpop.f32.mrf.mxu0
        %v1194 = vadd.f32 0.0, %v1193
        %v1195 = vpop.f32.mrf.mxu0
        %1196 = vdwg.mxu0
        %v1198 = vsel %vm905, %v945, 0
        %1200 = vmatprep.subr.mxu0 0.0
        %1201 = vmatpush1.msra.mxu0 0.0
        %1202 = vmatprep.subr.mxu0 0.0
        %1203 = vmatpush1.msra.mxu0 0.0
        %1204 = vmatprep.subr.mxu0 0.0
        %1205 = vmatpush1.msra.mxu0 0.0
        %1206 = vmatprep.subr.mxu0 0.0
        %1207 = vmatpush1.msra.mxu0 0.0
        %1208 = vmatprep.subr.mxu0 0.0
        %1209 = vmatpush1.msra.mxu0 0.0
        %1210 = vmatprep.subr.mxu0 0.0
        %1211 = vmatpush1.msra.mxu0 0.0
        %1212 = vmatprep.subr.mxu0 0.0
        %1213 = vmatpush1.msra.mxu0 0.0
        %1214 = vmatprep.subr.mxu0 0.0
        %1215 = vmatpush1.msra.mxu0 0.0
        %1216 = vmatprep.subr.mxu0 0.0
        %1217 = vmatpush1.msra.mxu0 0.0
        %1218 = vmatprep.subr.mxu0 0.0
        %1219 = vmatpush1.msra.mxu0 0.0
        %1220 = vmatprep.subr.mxu0 0.0
        %1221 = vmatpush1.msra.mxu0 0.0
        %1222 = vmatprep.subr.mxu0 0.0
        %1223 = vmatpush1.msra.mxu0 0.0
        %1224 = vmatprep.subr.mxu0 0.0
        %1225 = vmatpush1.msra.mxu0 0.0
        %1226 = vmatprep.subr.mxu0 0.0
        %1227 = vmatpush1.msra.mxu0 0.0
        %1228 = vmatprep.subr.mxu0 0.0
        %1229 = vmatpush1.msra.mxu0 0.0
        %1230 = vmatprep.subr.mxu0 0.0
        %1231 = vmatpush1.msra.mxu0 %v285
        %1232 = vmatprep.subr.mxu0 0.0
        %1233 = vmatpush2.msra.mxu0 0.0
        %1234 = vmatprep.subr.mxu0 0.0
        %1235 = vmatpush2.msra.mxu0 0.0
        %1236 = vmatprep.subr.mxu0 0.0
        %1237 = vmatpush2.msra.mxu0 0.0
        %1238 = vmatprep.subr.mxu0 0.0
        %1239 = vmatpush2.msra.mxu0 0.0
        %1240 = vmatprep.subr.mxu0 0.0
        %1241 = vmatpush2.msra.mxu0 0.0
        %1242 = vmatprep.subr.mxu0 0.0
        %1243 = vmatpush2.msra.mxu0 0.0
        %1244 = vmatprep.subr.mxu0 0.0
        %1245 = vmatpush2.msra.mxu0 0.0
        %1246 = vmatprep.subr.mxu0 0.0
        %1247 = vmatpush2.msra.mxu0 0.0
        %1248 = vmatprep.subr.mxu0 0.0
        %1249 = vmatpush2.msra.mxu0 0.0
        %1250 = vmatprep.subr.mxu0 0.0
        %1251 = vmatpush2.msra.mxu0 0.0
        %1252 = vmatprep.subr.mxu0 0.0
        %1253 = vmatpush2.msra.mxu0 0.0
        %1254 = vmatprep.subr.mxu0 0.0
        %1255 = vmatpush2.msra.mxu0 0.0
        %1256 = vmatprep.subr.mxu0 0.0
        %1257 = vmatpush2.msra.mxu0 0.0
        %1258 = vmatprep.subr.mxu0 0.0
        %1259 = vmatpush2.msra.mxu0 0.0
        %1260 = vmatprep.subr.mxu0 0.0
        %1261 = vmatpush2.msra.mxu0 0.0
        %1262 = vmatprep.subr.mxu0 0.0
        %1263 = vmatpush2.msra.mxu0 0.0
        %1264 = vmatprep.mubr.f32.mxu0 0.0
        %1265 = vmatmul.mubr.f32.gmra.mxu0 %v1198
        %v1266 = vpop.f32.mrf.mxu0
        %v1267 = vadd.f32 0.0, %v1266
        %v1268 = vpop.f32.mrf.mxu0
        %1269 = vdwg.mxu0
        %v1271 = vsel %vm905, %v947, 0
        %1273 = vmatprep.subr.mxu0 0.0
        %1274 = vmatpush1.msra.mxu0 0.0
        %1275 = vmatprep.subr.mxu0 0.0
        %1276 = vmatpush1.msra.mxu0 0.0
        %1277 = vmatprep.subr.mxu0 0.0
        %1278 = vmatpush1.msra.mxu0 0.0
        %1279 = vmatprep.subr.mxu0 0.0
        %1280 = vmatpush1.msra.mxu0 0.0
        %1281 = vmatprep.subr.mxu0 0.0
        %1282 = vmatpush1.msra.mxu0 0.0
        %1283 = vmatprep.subr.mxu0 0.0
        %1284 = vmatpush1.msra.mxu0 0.0
        %1285 = vmatprep.subr.mxu0 0.0
        %1286 = vmatpush1.msra.mxu0 0.0
        %1287 = vmatprep.subr.mxu0 0.0
        %1288 = vmatpush1.msra.mxu0 0.0
        %1289 = vmatprep.subr.mxu0 0.0
        %1290 = vmatpush1.msra.mxu0 0.0
        %1291 = vmatprep.subr.mxu0 0.0
        %1292 = vmatpush1.msra.mxu0 0.0
        %1293 = vmatprep.subr.mxu0 0.0
        %1294 = vmatpush1.msra.mxu0 0.0
        %1295 = vmatprep.subr.mxu0 0.0
        %1296 = vmatpush1.msra.mxu0 0.0
        %1297 = vmatprep.subr.mxu0 0.0
        %1298 = vmatpush1.msra.mxu0 0.0
        %1299 = vmatprep.subr.mxu0 0.0
        %1300 = vmatpush1.msra.mxu0 0.0
        %1301 = vmatprep.subr.mxu0 0.0
        %1302 = vmatpush1.msra.mxu0 0.0
        %1303 = vmatprep.subr.mxu0 0.0
        %1304 = vmatpush1.msra.mxu0 %v275
        %1305 = vmatprep.subr.mxu0 0.0
        %1306 = vmatpush2.msra.mxu0 0.0
        %1307 = vmatprep.subr.mxu0 0.0
        %1308 = vmatpush2.msra.mxu0 0.0
        %1309 = vmatprep.subr.mxu0 0.0
        %1310 = vmatpush2.msra.mxu0 0.0
        %1311 = vmatprep.subr.mxu0 0.0
        %1312 = vmatpush2.msra.mxu0 0.0
        %1313 = vmatprep.subr.mxu0 0.0
        %1314 = vmatpush2.msra.mxu0 0.0
        %1315 = vmatprep.subr.mxu0 0.0
        %1316 = vmatpush2.msra.mxu0 0.0
        %1317 = vmatprep.subr.mxu0 0.0
        %1318 = vmatpush2.msra.mxu0 0.0
        %1319 = vmatprep.subr.mxu0 0.0
        %1320 = vmatpush2.msra.mxu0 0.0
        %1321 = vmatprep.subr.mxu0 0.0
        %1322 = vmatpush2.msra.mxu0 0.0
        %1323 = vmatprep.subr.mxu0 0.0
        %1324 = vmatpush2.msra.mxu0 0.0
        %1325 = vmatprep.subr.mxu0 0.0
        %1326 = vmatpush2.msra.mxu0 0.0
        %1327 = vmatprep.subr.mxu0 0.0
        %1328 = vmatpush2.msra.mxu0 0.0
        %1329 = vmatprep.subr.mxu0 0.0
        %1330 = vmatpush2.msra.mxu0 0.0
        %1331 = vmatprep.subr.mxu0 0.0
        %1332 = vmatpush2.msra.mxu0 0.0
        %1333 = vmatprep.subr.mxu0 0.0
        %1334 = vmatpush2.msra.mxu0 0.0
        %1335 = vmatprep.subr.mxu0 0.0
        %1336 = vmatpush2.msra.mxu0 0.0
        %1337 = vmatprep.mubr.f32.mxu0 0.0
        %1338 = vmatmul.mubr.f32.gmra.mxu0 %v1271
        %v1339 = vpop.f32.mrf.mxu0
        %v1340 = vadd.f32 0.0, %v1339
        %v1341 = vpop.f32.mrf.mxu0
        %1342 = vdwg.mxu0
        %v1344 = vsel %vm905, %v949, 0
        %1346 = vmatprep.subr.mxu0 0.0
        %1347 = vmatpush1.msra.mxu0 0.0
        %1348 = vmatprep.subr.mxu0 0.0
        %1349 = vmatpush1.msra.mxu0 0.0
        %1350 = vmatprep.subr.mxu0 0.0
        %1351 = vmatpush1.msra.mxu0 0.0
        %1352 = vmatprep.subr.mxu0 0.0
        %1353 = vmatpush1.msra.mxu0 0.0
        %1354 = vmatprep.subr.mxu0 0.0
        %1355 = vmatpush1.msra.mxu0 0.0
        %1356 = vmatprep.subr.mxu0 0.0
        %1357 = vmatpush1.msra.mxu0 0.0
        %1358 = vmatprep.subr.mxu0 0.0
        %1359 = vmatpush1.msra.mxu0 0.0
        %1360 = vmatprep.subr.mxu0 0.0
        %1361 = vmatpush1.msra.mxu0 0.0
        %1362 = vmatprep.subr.mxu0 0.0
        %1363 = vmatpush1.msra.mxu0 0.0
        %1364 = vmatprep.subr.mxu0 0.0
        %1365 = vmatpush1.msra.mxu0 0.0
        %1366 = vmatprep.subr.mxu0 0.0
        %1367 = vmatpush1.msra.mxu0 0.0
        %1368 = vmatprep.subr.mxu0 0.0
        %1369 = vmatpush1.msra.mxu0 0.0
        %1370 = vmatprep.subr.mxu0 0.0
        %1371 = vmatpush1.msra.mxu0 0.0
        %1372 = vmatprep.subr.mxu0 0.0
        %1373 = vmatpush1.msra.mxu0 0.0
        %1374 = vmatprep.subr.mxu0 0.0
        %1375 = vmatpush1.msra.mxu0 0.0
        %1376 = vmatprep.subr.mxu0 0.0
        %1377 = vmatpush1.msra.mxu0 %v289
        %1378 = vmatprep.subr.mxu0 0.0
        %1379 = vmatpush2.msra.mxu0 0.0
        %1380 = vmatprep.subr.mxu0 0.0
        %1381 = vmatpush2.msra.mxu0 0.0
        %1382 = vmatprep.subr.mxu0 0.0
        %1383 = vmatpush2.msra.mxu0 0.0
        %1384 = vmatprep.subr.mxu0 0.0
        %1385 = vmatpush2.msra.mxu0 0.0
        %1386 = vmatprep.subr.mxu0 0.0
        %1387 = vmatpush2.msra.mxu0 0.0
        %1388 = vmatprep.subr.mxu0 0.0
        %1389 = vmatpush2.msra.mxu0 0.0
        %1390 = vmatprep.subr.mxu0 0.0
        %1391 = vmatpush2.msra.mxu0 0.0
        %1392 = vmatprep.subr.mxu0 0.0
        %1393 = vmatpush2.msra.mxu0 0.0
        %1394 = vmatprep.subr.mxu0 0.0
        %1395 = vmatpush2.msra.mxu0 0.0
        %1396 = vmatprep.subr.mxu0 0.0
        %1397 = vmatpush2.msra.mxu0 0.0
        %1398 = vmatprep.subr.mxu0 0.0
        %1399 = vmatpush2.msra.mxu0 0.0
        %1400 = vmatprep.subr.mxu0 0.0
        %1401 = vmatpush2.msra.mxu0 0.0
        %1402 = vmatprep.subr.mxu0 0.0
        %1403 = vmatpush2.msra.mxu0 0.0
        %1404 = vmatprep.subr.mxu0 0.0
        %1405 = vmatpush2.msra.mxu0 0.0
        %1406 = vmatprep.subr.mxu0 0.0
        %1407 = vmatpush2.msra.mxu0 0.0
        %1408 = vmatprep.subr.mxu0 0.0
        %1409 = vmatpush2.msra.mxu0 0.0
        %1410 = vmatprep.mubr.f32.mxu0 0.0
        %1411 = vmatmul.mubr.f32.gmra.mxu0 %v1344
        %v1412 = vpop.f32.mrf.mxu0
        %v1413 = vadd.f32 0.0, %v1412
        %v1414 = vpop.f32.mrf.mxu0
        %1415 = vdwg.mxu0
        %v1417 = vsel %vm905, %v951, 0
        %1419 = vmatprep.subr.mxu0 0.0
        %1420 = vmatpush1.msra.mxu0 0.0
        %1421 = vmatprep.subr.mxu0 0.0
        %1422 = vmatpush1.msra.mxu0 0.0
        %1423 = vmatprep.subr.mxu0 0.0
        %1424 = vmatpush1.msra.mxu0 0.0
        %1425 = vmatprep.subr.mxu0 0.0
        %1426 = vmatpush1.msra.mxu0 0.0
        %1427 = vmatprep.subr.mxu0 0.0
        %1428 = vmatpush1.msra.mxu0 0.0
        %1429 = vmatprep.subr.mxu0 0.0
        %1430 = vmatpush1.msra.mxu0 0.0
        %1431 = vmatprep.subr.mxu0 0.0
        %1432 = vmatpush1.msra.mxu0 0.0
        %1433 = vmatprep.subr.mxu0 0.0
        %1434 = vmatpush1.msra.mxu0 0.0
        %1435 = vmatprep.subr.mxu0 0.0
        %1436 = vmatpush1.msra.mxu0 0.0
        %1437 = vmatprep.subr.mxu0 0.0
        %1438 = vmatpush1.msra.mxu0 0.0
        %1439 = vmatprep.subr.mxu0 0.0
        %1440 = vmatpush1.msra.mxu0 0.0
        %1441 = vmatprep.subr.mxu0 0.0
        %1442 = vmatpush1.msra.mxu0 0.0
        %1443 = vmatprep.subr.mxu0 0.0
        %1444 = vmatpush1.msra.mxu0 0.0
        %1445 = vmatprep.subr.mxu0 0.0
        %1446 = vmatpush1.msra.mxu0 0.0
        %1447 = vmatprep.subr.mxu0 0.0
        %1448 = vmatpush1.msra.mxu0 0.0
        %1449 = vmatprep.subr.mxu0 0.0
        %1450 = vmatpush1.msra.mxu0 %v292
        %1451 = vmatprep.subr.mxu0 0.0
        %1452 = vmatpush2.msra.mxu0 0.0
        %1453 = vmatprep.subr.mxu0 0.0
        %1454 = vmatpush2.msra.mxu0 0.0
        %1455 = vmatprep.subr.mxu0 0.0
        %1456 = vmatpush2.msra.mxu0 0.0
        %1457 = vmatprep.subr.mxu0 0.0
        %1458 = vmatpush2.msra.mxu0 0.0
        %1459 = vmatprep.subr.mxu0 0.0
        %1460 = vmatpush2.msra.mxu0 0.0
        %1461 = vmatprep.subr.mxu0 0.0
        %1462 = vmatpush2.msra.mxu0 0.0
        %1463 = vmatprep.subr.mxu0 0.0
        %1464 = vmatpush2.msra.mxu0 0.0
        %1465 = vmatprep.subr.mxu0 0.0
        %1466 = vmatpush2.msra.mxu0 0.0
        %1467 = vmatprep.subr.mxu0 0.0
        %1468 = vmatpush2.msra.mxu0 0.0
        %1469 = vmatprep.subr.mxu0 0.0
        %1470 = vmatpush2.msra.mxu0 0.0
        %1471 = vmatprep.subr.mxu0 0.0
        %1472 = vmatpush2.msra.mxu0 0.0
        %1473 = vmatprep.subr.mxu0 0.0
        %1474 = vmatpush2.msra.mxu0 0.0
        %1475 = vmatprep.subr.mxu0 0.0
        %1476 = vmatpush2.msra.mxu0 0.0
        %1477 = vmatprep.subr.mxu0 0.0
        %1478 = vmatpush2.msra.mxu0 0.0
        %1479 = vmatprep.subr.mxu0 0.0
        %1480 = vmatpush2.msra.mxu0 0.0
        %1481 = vmatprep.subr.mxu0 0.0
        %1482 = vmatpush2.msra.mxu0 0.0
        %1483 = vmatprep.mubr.f32.mxu0 0.0
        %1484 = vmatmul.mubr.f32.gmra.mxu0 %v1417
        %v1485 = vpop.f32.mrf.mxu0
        %v1486 = vadd.f32 0.0, %v1485
        %v1487 = vpop.f32.mrf.mxu0
        %1488 = vdwg.mxu0
        %v1490 = vsel %vm905, %v953, 0
        %1492 = vmatprep.subr.mxu0 0.0
        %1493 = vmatpush1.msra.mxu0 0.0
        %1494 = vmatprep.subr.mxu0 0.0
        %1495 = vmatpush1.msra.mxu0 0.0
        %1496 = vmatprep.subr.mxu0 0.0
        %1497 = vmatpush1.msra.mxu0 0.0
        %1498 = vmatprep.subr.mxu0 0.0
        %1499 = vmatpush1.msra.mxu0 0.0
        %1500 = vmatprep.subr.mxu0 0.0
        %1501 = vmatpush1.msra.mxu0 0.0
        %1502 = vmatprep.subr.mxu0 0.0
        %1503 = vmatpush1.msra.mxu0 0.0
        %1504 = vmatprep.subr.mxu0 0.0
        %1505 = vmatpush1.msra.mxu0 0.0
        %1506 = vmatprep.subr.mxu0 0.0
        %1507 = vmatpush1.msra.mxu0 0.0
        %1508 = vmatprep.subr.mxu0 0.0
        %1509 = vmatpush1.msra.mxu0 0.0
        %1510 = vmatprep.subr.mxu0 0.0
        %1511 = vmatpush1.msra.mxu0 0.0
        %1512 = vmatprep.subr.mxu0 0.0
        %1513 = vmatpush1.msra.mxu0 0.0
        %1514 = vmatprep.subr.mxu0 0.0
        %1515 = vmatpush1.msra.mxu0 0.0
        %1516 = vmatprep.subr.mxu0 0.0
        %1517 = vmatpush1.msra.mxu0 0.0
        %1518 = vmatprep.subr.mxu0 0.0
        %1519 = vmatpush1.msra.mxu0 0.0
        %1520 = vmatprep.subr.mxu0 0.0
        %1521 = vmatpush1.msra.mxu0 0.0
        %1522 = vmatprep.subr.mxu0 0.0
        %1523 = vmatpush1.msra.mxu0 %v295
        %1524 = vmatprep.subr.mxu0 0.0
        %1525 = vmatpush2.msra.mxu0 0.0
        %1526 = vmatprep.subr.mxu0 0.0
        %1527 = vmatpush2.msra.mxu0 0.0
        %1528 = vmatprep.subr.mxu0 0.0
        %1529 = vmatpush2.msra.mxu0 0.0
        %1530 = vmatprep.subr.mxu0 0.0
        %1531 = vmatpush2.msra.mxu0 0.0
        %1532 = vmatprep.subr.mxu0 0.0
        %1533 = vmatpush2.msra.mxu0 0.0
        %1534 = vmatprep.subr.mxu0 0.0
        %1535 = vmatpush2.msra.mxu0 0.0
        %1536 = vmatprep.subr.mxu0 0.0
        %1537 = vmatpush2.msra.mxu0 0.0
        %1538 = vmatprep.subr.mxu0 0.0
        %1539 = vmatpush2.msra.mxu0 0.0
        %1540 = vmatprep.subr.mxu0 0.0
        %1541 = vmatpush2.msra.mxu0 0.0
        %1542 = vmatprep.subr.mxu0 0.0
        %1543 = vmatpush2.msra.mxu0 0.0
        %1544 = vmatprep.subr.mxu0 0.0
        %1545 = vmatpush2.msra.mxu0 0.0
        %1546 = vmatprep.subr.mxu0 0.0
        %1547 = vmatpush2.msra.mxu0 0.0
        %1548 = vmatprep.subr.mxu0 0.0
        %1549 = vmatpush2.msra.mxu0 0.0
        %1550 = vmatprep.subr.mxu0 0.0
        %1551 = vmatpush2.msra.mxu0 0.0
        %1552 = vmatprep.subr.mxu0 0.0
        %1553 = vmatpush2.msra.mxu0 0.0
        %1554 = vmatprep.subr.mxu0 0.0
        %1555 = vmatpush2.msra.mxu0 0.0
        %1556 = vmatprep.mubr.f32.mxu0 0.0
        %1557 = vmatmul.mubr.f32.gmra.mxu0 %v1490
        %v1558 = vpop.f32.mrf.mxu0
        %v1559 = vadd.f32 0.0, %v1558
        %v1560 = vpop.f32.mrf.mxu0
        %1561 = vdwg.mxu0
        %v1562 = vrcp.pop %v956
        %v1563 = vrcp.pop %v959
        %v1564 = vrcp.pop %v962
        %v1565 = vrcp.pop %v965
        %v1566 = vrcp.pop %v968
        %v1567 = vrcp.pop %v971
        %v1568 = vrcp.pop %v974
        %v1569 = vrcp.pop %v977
        %v1570 = vmul.f32 %v1048, %v1562
        %v1571 = vmul.f32 %v1121, %v1563
        %v1572 = vmul.f32 %v1194, %v1564
        %v1573 = vmul.f32 %v1267, %v1565
        %v1574 = vmul.f32 %v1340, %v1566
        %v1575 = vmul.f32 %v1413, %v1567
        %v1576 = vmul.f32 %v1486, %v1568
        %v1577 = vmul.f32 %v1559, %v1569
        %1579 = vrot.lane.b32.xlu0 %v1571, 32
        %v1580 = vpop.permute.xlu0 %1579
        %1583 = vrot.lane.b32.xlu0 %v1572, 64
        %v1584 = vpop.permute.xlu0 %1583
        %1587 = vrot.lane.b32.xlu0 %v1573, 96
        %v1588 = vpop.permute.xlu0 %1587
        %1591 = vrot.lane.b32.xlu0 %v1575, 32
        %v1592 = vpop.permute.xlu0 %1591
        %1595 = vrot.lane.b32.xlu0 %v1576, 64
        %v1596 = vpop.permute.xlu0 %1595
        %1599 = vrot.lane.b32.xlu0 %v1577, 96
        %v1600 = vpop.permute.xlu0 %1599
        %v1602 = vsel %vm202, %v1570, %v1580
        %vm1603 = vcmask 523264
        %v1604 = vsel %vm1603, %v1602, %v1584
        %vm1605 = vcmask 785408
        %v1606 = vsel %vm1605, %v1604, %v1588
        %v1607 = vsel %vm202, %v1574, %v1592
        %v1608 = vsel %vm1603, %v1607, %v1596
        %v1609 = vsel %vm1605, %v1608, %v1600
        %v1610 = vld [vmem:[%s2] sm:$0xff]
        %v1611 = vld [vmem:[%s2 + $0x8] sm:$0xff]
        %v1612 = vld [vmem:[%s2 + $0x10] sm:$0xff]
        %v1613 = vld [vmem:[%s2 + $0x18] sm:$0xff]
        %v1614 = vld [vmem:[%s2 + $0x20] sm:$0xff]
        %v1615 = vld [vmem:[%s2 + $0x28] sm:$0xff]
        %v1616 = vld [vmem:[%s2 + $0x30] sm:$0xff]
        %v1617 = vld [vmem:[%s2 + $0x38] sm:$0xff]
        %v1618 = vld [vmem:[%s2 + $0x40] sm:$0xff]
        %v1619 = vld [vmem:[%s2 + $0x48] sm:$0xff]
        %v1620 = vld [vmem:[%s2 + $0x50] sm:$0xff]
        %v1621 = vld [vmem:[%s2 + $0x58] sm:$0xff]
        %v1622 = vld [vmem:[%s2 + $0x60] sm:$0xff]
        %v1623 = vld [vmem:[%s2 + $0x68] sm:$0xff]
        %v1624 = vld [vmem:[%s2 + $0x70] sm:$0xff]
        %v1625 = vld [vmem:[%s2 + $0x78] sm:$0xff]
        %v1626 = vld [vmem:[%s2 + $0x80] sm:$0xff]
        %v1627 = vld [vmem:[%s2 + $0x88] sm:$0xff]
        %v1628 = vld [vmem:[%s2 + $0x90] sm:$0xff]
        %v1629 = vld [vmem:[%s2 + $0x98] sm:$0xff]
        %v1630 = vld [vmem:[%s2 + $0xa0] sm:$0xff]
        %v1631 = vld [vmem:[%s2 + $0xa8] sm:$0xff]
        %v1632 = vld [vmem:[%s2 + $0xb0] sm:$0xff]
        %v1633 = vld [vmem:[%s2 + $0xb8] sm:$0xff]
        %v1634 = vld [vmem:[%s2 + $0xc0] sm:$0xff]
        %v1635 = vld [vmem:[%s2 + $0xc8] sm:$0xff]
        %v1636 = vld [vmem:[%s2 + $0xd0] sm:$0xff]
        %v1637 = vld [vmem:[%s2 + $0xd8] sm:$0xff]
        %v1638 = vld [vmem:[%s2 + $0xe0] sm:$0xff]
        %v1639 = vld [vmem:[%s2 + $0xe8] sm:$0xff]
        %v1640 = vld [vmem:[%s2 + $0xf0] sm:$0xff]
        %v1641 = vld [vmem:[%s2 + $0xf8] sm:$0xff]
        %v1642 = vld [vmem:[%s3] sm:$0x1]
        %v1644 = vlaneseq
        %v1645 = vshrl.u32 %v1644, 7
        %v1646 = vsub.s32 0, %v1645
        %v1647 = vrot.slane %v1642, %v1646
        %1649 = vmatprep.subr.mxu0 0.0
        %1650 = vmatpush1.msra.mxu0 %v1625
        %1651 = vmatprep.subr.mxu0 0.0
        %1652 = vmatpush1.msra.mxu0 %v1624
        %1653 = vmatprep.subr.mxu0 0.0
        %1654 = vmatpush1.msra.mxu0 %v1623
        %1655 = vmatprep.subr.mxu0 0.0
        %1656 = vmatpush1.msra.mxu0 %v1622
        %1657 = vmatprep.subr.mxu0 0.0
        %1658 = vmatpush1.msra.mxu0 %v1621
        %1659 = vmatprep.subr.mxu0 0.0
        %1660 = vmatpush1.msra.mxu0 %v1620
        %1661 = vmatprep.subr.mxu0 0.0
        %1662 = vmatpush1.msra.mxu0 %v1619
        %1663 = vmatprep.subr.mxu0 0.0
        %1664 = vmatpush1.msra.mxu0 %v1618
        %1665 = vmatprep.subr.mxu0 0.0
        %1666 = vmatpush1.msra.mxu0 %v1617
        %1667 = vmatprep.subr.mxu0 0.0
        %1668 = vmatpush1.msra.mxu0 %v1616
        %1669 = vmatprep.subr.mxu0 0.0
        %1670 = vmatpush1.msra.mxu0 %v1615
        %1671 = vmatprep.subr.mxu0 0.0
        %1672 = vmatpush1.msra.mxu0 %v1614
        %1673 = vmatprep.subr.mxu0 0.0
        %1674 = vmatpush1.msra.mxu0 %v1613
        %1675 = vmatprep.subr.mxu0 0.0
        %1676 = vmatpush1.msra.mxu0 %v1612
        %1677 = vmatprep.subr.mxu0 0.0
        %1678 = vmatpush1.msra.mxu0 %v1611
        %1679 = vmatprep.subr.mxu0 0.0
        %1680 = vmatpush1.msra.mxu0 %v1610
        %1681 = vmatprep.subr.mxu0 0.0
        %1682 = vmatpush2.msra.mxu0 %v1641
        %1683 = vmatprep.subr.mxu0 0.0
        %1684 = vmatpush2.msra.mxu0 %v1640
        %1685 = vmatprep.subr.mxu0 0.0
        %1686 = vmatpush2.msra.mxu0 %v1639
        %1687 = vmatprep.subr.mxu0 0.0
        %1688 = vmatpush2.msra.mxu0 %v1638
        %1689 = vmatprep.subr.mxu0 0.0
        %1690 = vmatpush2.msra.mxu0 %v1637
        %1691 = vmatprep.subr.mxu0 0.0
        %1692 = vmatpush2.msra.mxu0 %v1636
        %1693 = vmatprep.subr.mxu0 0.0
        %1694 = vmatpush2.msra.mxu0 %v1635
        %1695 = vmatprep.subr.mxu0 0.0
        %1696 = vmatpush2.msra.mxu0 %v1634
        %1697 = vmatprep.subr.mxu0 0.0
        %1698 = vmatpush2.msra.mxu0 %v1633
        %1699 = vmatprep.subr.mxu0 0.0
        %1700 = vmatpush2.msra.mxu0 %v1632
        %1701 = vmatprep.subr.mxu0 0.0
        %1702 = vmatpush2.msra.mxu0 %v1631
        %1703 = vmatprep.subr.mxu0 0.0
        %1704 = vmatpush2.msra.mxu0 %v1630
        %1705 = vmatprep.subr.mxu0 0.0
        %1706 = vmatpush2.msra.mxu0 %v1629
        %1707 = vmatprep.subr.mxu0 0.0
        %1708 = vmatpush2.msra.mxu0 %v1628
        %1709 = vmatprep.subr.mxu0 0.0
        %1710 = vmatpush2.msra.mxu0 %v1627
        %1711 = vmatprep.subr.mxu0 0.0
        %1712 = vmatpush2.msra.mxu0 %v1626
        %1713 = vmatprep.mubr.f32.mxu0 %v1609
        %1714 = vmatmul.mubr.f32.gmra.mxu0 %v1606
        %v1715 = vpop.f32.mrf.mxu0
        %v1716 = vadd.f32 %v1647, %v1715
        %v1717 = vpop.f32.mrf.mxu0
        %1718 = vdwg.mxu0
        %1719 = vst.msk [vmem:[%s188] sm:$0xff] %vm202, %v1716
        %s1720 = sand.u32 %s115, 1
        %s1721 = scalar_lea.sflag [#allocation3], %s1720
        %s1722 = sand.u32 %s115, 1
        %s1723 = smul.addr %s1722, 8
        %s1724 = scalar_lea.vmem [#allocation2], %s1723
        // Predicated region
        $region37: #{tpu_custom_call.1} parent=35 // pred_check
          %p1725 = pneg %p125
        $region38: #{tpu_custom_call.1} parent=35 // pred_check_branch
          %1727 = sbr.rel (%p1725) target = $region40
        $region39: #{tpu_custom_call.1} parent=35 // pred_region
          %s1729 = ssub.s32 128, 128
          %1730 = vsyncadd %s1721, %s1729
          %s1731 = smul.addr %s18, 128
          %s1732 = scalar_lea.hbm %s4, %s1731
          %s1734 = sshll.u32 %s1724, 4
          %s1735 = int_to_ptr.vmem [resolvable:$true] %s1734
          %1737 = dma.vmem_to_hbm [thread:$0]  %s1735, 128, %s1732, %s1721
        $region40: #{tpu_custom_call.1} parent=35 // pred_fallthru
          _
      $region36: #{tpu_custom_call.1} parent=5 // pred_fallthru
        _
      %p1738 = scmp.le.s32.totalorder 2, %s13
      // Predicated region
      $region41: #{tpu_custom_call.1} parent=5 // pred_check
        %p1739 = pneg %p1738
      $region42: #{tpu_custom_call.1} parent=5 // pred_check_branch
        %1741 = sbr.rel (%p1739) target = $region44
      $region43: #{tpu_custom_call.1} parent=5 // pred_region
        %s1742 = ssub.s32 %s13, 2
        // Predicated region
        $region45: #{tpu_custom_call.1} parent=43 // pred_check
          %p1743 = pneg %p131
        $region46: #{tpu_custom_call.1} parent=43 // pred_check_branch
          %1745 = sbr.rel (%p1743) target = $region48
        $region47: #{tpu_custom_call.1} parent=43 // pred_region
          %s1746 = sand.u32 %s116, 1
          %s1747 = scalar_lea.sflag [#allocation3], %s1746
          %s1748 = sand.u32 %s116, 1
          %s1749 = smul.addr %s1748, 8
          %s1750 = scalar_lea.vmem [#allocation2], %s1749
          %1751 = dma.done %s1747, 128
        $region48: #{tpu_custom_call.1} parent=43 // pred_fallthru
          _
      $region44: #{tpu_custom_call.1} parent=5 // pred_fallthru
        _
    $region6: #{tpu_custom_call.1} parent=1 // loop_footer
      %s17 = sadd.s32 1, %s13
    $region7: #{tpu_custom_call.1} parent=1 // loop_footer_branch
      %12 = sbr.rel target = $region3
    $region8: #{tpu_custom_call.1} parent=1 // loop_exit
      _
    %1752 = vsyncpa [#allocation3], 1
    %s1753 = scalar_lea.sflag [#allocation3], 1
    %1754 = vsyncpa %s1753, 1

</llo_original>
